<compile_context>
chip_gen: v7x
topology: tpu7x:2x2x1
jax: 0.10.0
libtpu: 0.0.40
codegen_flags: <defaults>
</compile_context>

<pallas_src>
import functools

import jax
import jax.numpy as jnp
from jax import lax
from jax.experimental import pallas as pl
from jax.experimental.pallas import tpu as pltpu


# ---------------------------------------------------------------------------
# Fused kernel: grid = (batch, layer); one encoder layer per grid step.
# ---------------------------------------------------------------------------
def encoder_layer_kernel(src_ref, pos_ref,
                         wqk_ref, bqk_ref, wv_ref, bv_ref,
                         wo_ref, bo_ref,
                         ln1w_ref, ln1b_ref,
                         lin1w_ref, lin1b_ref, lin2w_ref, lin2b_ref,
                         ln2w_ref, ln2b_ref,
                         out_ref, *, nhead):
    layer = pl.program_id(1)

    # Activation is carried in the (VMEM-resident) output block across layers.
    @pl.when(layer == 0)
    def _():
        out_ref[...] = src_ref[...]

    x = out_ref[...].astype(jnp.float32)          # (S, D) running activation
    pos = pos_ref[...].astype(jnp.float32)        # (S, D)
    S, D = x.shape
    hd = D // nhead

    def matmul(a, w_t):
        # a: (S, Din) f32 activations, w_t: (E, Din) bf16 (PyTorch Linear layout)
        return lax.dot_general(a.astype(jnp.bfloat16), w_t,
                               (((1,), (1,)), ((), ())),
                               preferred_element_type=jnp.float32)

    # --- multi-head self-attention --------------------------------------
    qk_in = x + pos                                # with_pos_embed
    # fused Q/K projection (scale already folded into Q weights/bias on host)
    qk = matmul(qk_in, wqk_ref[...]) + bqk_ref[...]   # (S, 2D)
    q = qk[:, :D]
    k = qk[:, D:]
    v = matmul(x, wv_ref[...]) + bv_ref[...]          # (S, D)

    def split_heads(t):                               # (S, D) -> (H, S, hd)
        return t.reshape(S, nhead, hd).swapaxes(0, 1)

    qh = split_heads(q).astype(jnp.bfloat16)
    kh = split_heads(k).astype(jnp.bfloat16)
    vh = split_heads(v).astype(jnp.bfloat16)

    s = jnp.einsum('hqd,hkd->hqk', qh, kh,
                   preferred_element_type=jnp.float32)    # (H, S, S)
    s = s - s.max(axis=-1, keepdims=True)                 # stable softmax
    p = jnp.exp(s)
    p = p * pl.reciprocal(p.sum(axis=-1, keepdims=True), approx=True)
    attn = jnp.einsum('hqk,hkd->hqd', p.astype(jnp.bfloat16), vh,
                      preferred_element_type=jnp.float32)  # (H, S, hd)
    attn = attn.swapaxes(0, 1).reshape(S, D)
    attn = matmul(attn, wo_ref[...]) + bo_ref[...]

    def layernorm(z, w, b):                               # w, b: (1, D)
        mu = z.mean(axis=-1, keepdims=True)
        var = ((z - mu) ** 2).mean(axis=-1, keepdims=True)
        return (z - mu) * lax.rsqrt(var + 1e-5) * w + b

    # residual + norm1
    x1 = layernorm(x + attn, ln1w_ref[...], ln1b_ref[...])

    # --- feed-forward ----------------------------------------------------
    h1 = jnp.maximum(matmul(x1, lin1w_ref[...]) + lin1b_ref[...], 0.0)  # ReLU
    ff = matmul(h1, lin2w_ref[...]) + lin2b_ref[...]

    # residual + norm2; write back into the resident activation block
    y = layernorm(x1 + ff, ln2w_ref[...], ln2b_ref[...])
    out_ref[...] = y.astype(out_ref.dtype)


# ---------------------------------------------------------------------------
# Wrapper: one pallas_call over grid (B, num_layers)
# ---------------------------------------------------------------------------
def transformer_encoder_pallas(src, pos, stacked_params, *, nhead):
    B, S, D = src.shape
    (wqk, bqk, wv, bv, wo, bo, ln1w, ln1b,
     lin1w, lin1b, lin2w, lin2b, ln2w, ln2b) = stacked_params
    L = wqk.shape[0]
    F = lin1w.shape[1]

    def act_spec():
        return pl.BlockSpec((None, S, D), lambda b, l: (b, 0, 0))

    def wspec(per_layer_shape):
        nd = len(per_layer_shape)
        return pl.BlockSpec((None,) + tuple(per_layer_shape),
                            lambda b, l, _nd=nd: (l,) + (0,) * _nd)

    kernel = functools.partial(encoder_layer_kernel, nhead=nhead)

    grid_spec = pltpu.PrefetchScalarGridSpec(
        num_scalar_prefetch=0,
        grid=(B, L),
        in_specs=[
            act_spec(),                 # src
            act_spec(),                 # pos
            wspec((2 * D, D)),          # wqk (Q scale folded in)
            wspec((1, 2 * D)),          # bqk
            wspec((D, D)),              # wv
            wspec((1, D)),              # bv
            wspec((D, D)),              # wo
            wspec((1, D)),              # bo
            wspec((1, D)),              # ln1w
            wspec((1, D)),              # ln1b
            wspec((F, D)),              # lin1w
            wspec((1, F)),              # lin1b
            wspec((D, F)),              # lin2w
            wspec((1, D)),              # lin2b
            wspec((1, D)),              # ln2w
            wspec((1, D)),              # ln2b
        ],
        out_specs=pl.BlockSpec((None, S, D), lambda b, l: (b, 0, 0)),
    )

    return pl.pallas_call(
        kernel,
        out_shape=jax.ShapeDtypeStruct((B, S, D), src.dtype),
        grid_spec=grid_spec,
        compiler_params=pltpu.CompilerParams(
            dimension_semantics=("parallel", "arbitrary"),
            vmem_limit_bytes=32 * 1024 * 1024,
        ),
    )(src, pos, wqk, bqk, wv, bv, wo, bo, ln1w, ln1b,
      lin1w, lin1b, lin2w, lin2b, ln2w, ln2b)


# ---------------------------------------------------------------------------
# Host-side parameter preparation:
#  - fold 1/sqrt(head_dim) into the Q weights/bias
#  - split fused qkv into a fused (Q|K) matrix (shared input) and V matrix
#  - cast weight matrices to bf16 (biases / LN params stay f32)
#  - stack per-layer params along a leading L axis
# ---------------------------------------------------------------------------
def stack_and_prepare_params(layer_params_list, d_model, nhead):
    D = d_model
    scale = (D // nhead) ** -0.5
    cols = [[] for _ in range(14)]
    for p in layer_params_list:
        (wqkv, bqkv, wo, bo, ln1w, ln1b,
         lin1w, lin1b, lin2w, lin2b, ln2w, ln2b) = p
        wqk = jnp.concatenate([wqkv[0:D] * scale, wqkv[D:2 * D]], axis=0)
        bqk = jnp.concatenate([bqkv[:, 0:D] * scale, bqkv[:, D:2 * D]], axis=1)
        wv = wqkv[2 * D:3 * D]
        bv = bqkv[:, 2 * D:3 * D]
        for c, a in zip(cols, (wqk, bqk, wv, bv, wo, bo, ln1w, ln1b,
                               lin1w, lin1b, lin2w, lin2b, ln2w, ln2b)):
            c.append(a)
    bf16_idx = {0, 2, 4, 8, 10}          # weight matrices -> bf16
    out = []
    for i, c in enumerate(cols):
        stacked = jnp.stack(c)
        out.append(stacked.astype(jnp.bfloat16) if i in bf16_idx
                   else stacked.astype(jnp.float32))
    return tuple(out)


# ---------------------------------------------------------------------------
# Pure-JAX f32 reference (same math) for correctness check
# ---------------------------------------------------------------------------
def encoder_layer_ref(src, pos, params, *, nhead):
    (wqkv, bqkv, wo, bo, ln1w, ln1b,
     lin1w, lin1b, lin2w, lin2b, ln2w, ln2b) = params
    B, S, D = src.shape
    hd = D // nhead
    qk_in = src + pos

    def proj(x, w, b):
        return x @ w.T + b[0]

    q = proj(qk_in, wqkv[0:D], bqkv[:, 0:D])
    k = proj(qk_in, wqkv[D:2 * D], bqkv[:, D:2 * D])
    v = proj(src, wqkv[2 * D:3 * D], bqkv[:, 2 * D:3 * D])

    q = q.reshape(B, S, nhead, hd) * (hd ** -0.5)
    k = k.reshape(B, S, nhead, hd)
    v = v.reshape(B, S, nhead, hd)
    s = jnp.einsum('bqhd,bkhd->bhqk', q, k)
    p = jax.nn.softmax(s, axis=-1)
    attn = jnp.einsum('bhqk,bkhd->bqhd', p, v).reshape(B, S, D)
    attn = proj(attn, wo, bo)

    def layernorm(x, w, b):
        mu = x.mean(-1, keepdims=True)
        var = ((x - mu) ** 2).mean(-1, keepdims=True)
        return (x - mu) * lax.rsqrt(var + 1e-5) * w[0] + b[0]

    x = layernorm(src + attn, ln1w, ln1b)
    ff = proj(jnp.maximum(proj(x, lin1w, lin1b), 0.0), lin2w, lin2b)
    return layernorm(x + ff, ln2w, ln2b)


def transformer_encoder_ref(src, pos, layer_params_list, *, nhead):
    out = src
    for params in layer_params_list:
        out = encoder_layer_ref(out, pos, params, nhead=nhead)
    return out


# ---------------------------------------------------------------------------
# Deterministic synthetic parameters (PyTorch layout, f32)
# ---------------------------------------------------------------------------
def init_layer_params(key, d_model, dim_ff):
    ks = jax.random.split(key, 8)
    s = 0.05
    wqkv = s * jax.random.normal(ks[0], (3 * d_model, d_model), jnp.float32)
    bqkv = s * jax.random.normal(ks[1], (1, 3 * d_model), jnp.float32)
    wo   = s * jax.random.normal(ks[2], (d_model, d_model), jnp.float32)
    bo   = s * jax.random.normal(ks[3], (1, d_model), jnp.float32)
    ln1w = jnp.ones((1, d_model), jnp.float32)
    ln1b = jnp.zeros((1, d_model), jnp.float32)
    lin1w = s * jax.random.normal(ks[4], (dim_ff, d_model), jnp.float32)
    lin1b = s * jax.random.normal(ks[5], (1, dim_ff), jnp.float32)
    lin2w = s * jax.random.normal(ks[6], (d_model, dim_ff), jnp.float32)
    lin2b = s * jax.random.normal(ks[7], (1, d_model), jnp.float32)
    ln2w = jnp.ones((1, d_model), jnp.float32)
    ln2b = jnp.zeros((1, d_model), jnp.float32)
    return (wqkv, bqkv, wo, bo, ln1w, ln1b,
            lin1w, lin1b, lin2w, lin2b, ln2w, ln2b)


# ---------------------------------------------------------------------------
if __name__ == "__main__":
    B, S, D = 2, 8, 32        # batch, sequence (flattened HW), d_model
    NHEAD, DIM_FF = 4, 64
    NUM_LAYERS = 2

    root = jax.random.PRNGKey(0)
    k_src, k_pos, k_params = jax.random.split(root, 3)
    src = jax.random.normal(k_src, (B, S, D), jnp.float32)
    pos = jax.random.normal(k_pos, (B, S, D), jnp.float32)

    layer_keys = jax.random.split(k_params, NUM_LAYERS)
    layer_params = [init_layer_params(k, D, DIM_FF) for k in layer_keys]
    stacked = stack_and_prepare_params(layer_params, D, NHEAD)

    out = transformer_encoder_pallas(src, pos, stacked, nhead=NHEAD)
    out = jax.block_until_ready(out)

    ref = transformer_encoder_ref(src, pos, layer_params, nhead=NHEAD)
    ref = jax.block_until_ready(ref)

    assert out.shape == (B, S, D)
    max_err = jnp.max(jnp.abs(out - ref))
    # bf16 matmuls + approximate reciprocal -> loosened tolerance vs f32 ref.
    assert jnp.allclose(out, ref, atol=3e-2, rtol=3e-2), f"max abs err {max_err}"

    print("KERNEL_OK")
</pallas_src>

<mosaic_0001>
module attributes {stable_mosaic.version = 11 : i64} {
  func.func @encoder_layer_kernel(%arg0: i32, %arg1: i32, %arg2: memref<1x8x32xf32, #tpu.memory_space<vmem>>, %arg3: memref<1x8x32xf32, #tpu.memory_space<vmem>>, %arg4: memref<1x64x32xbf16, #tpu.memory_space<vmem>>, %arg5: memref<1x1x64xf32, #tpu.memory_space<vmem>>, %arg6: memref<1x32x32xbf16, #tpu.memory_space<vmem>>, %arg7: memref<1x1x32xf32, #tpu.memory_space<vmem>>, %arg8: memref<1x32x32xbf16, #tpu.memory_space<vmem>>, %arg9: memref<1x1x32xf32, #tpu.memory_space<vmem>>, %arg10: memref<1x1x32xf32, #tpu.memory_space<vmem>>, %arg11: memref<1x1x32xf32, #tpu.memory_space<vmem>>, %arg12: memref<1x64x32xbf16, #tpu.memory_space<vmem>>, %arg13: memref<1x1x64xf32, #tpu.memory_space<vmem>>, %arg14: memref<1x32x64xbf16, #tpu.memory_space<vmem>>, %arg15: memref<1x1x32xf32, #tpu.memory_space<vmem>>, %arg16: memref<1x1x32xf32, #tpu.memory_space<vmem>>, %arg17: memref<1x1x32xf32, #tpu.memory_space<vmem>>, %arg18: memref<1x8x32xf32, #tpu.memory_space<vmem>>) attributes {dimension_semantics = [#tpu.dimension_semantics<parallel>, #tpu.dimension_semantics<arbitrary>], iteration_bounds = array<i64: 2, 2>, scalar_prefetch = 0 : i64, scratch_operands = 0 : i64, tpu.core_type = #tpu.core_type<tc>, window_params = [{transform_indices = @transform_0, window_bounds = array<i64: 1, 8, 32>}, {transform_indices = @transform_1, window_bounds = array<i64: 1, 8, 32>}, {transform_indices = @transform_2, window_bounds = array<i64: 1, 64, 32>}, {transform_indices = @transform_3, window_bounds = array<i64: 1, 1, 64>}, {transform_indices = @transform_4, window_bounds = array<i64: 1, 32, 32>}, {transform_indices = @transform_5, window_bounds = array<i64: 1, 1, 32>}, {transform_indices = @transform_6, window_bounds = array<i64: 1, 32, 32>}, {transform_indices = @transform_7, window_bounds = array<i64: 1, 1, 32>}, {transform_indices = @transform_8, window_bounds = array<i64: 1, 1, 32>}, {transform_indices = @transform_9, window_bounds = array<i64: 1, 1, 32>}, {transform_indices = @transform_10, window_bounds = array<i64: 1, 64, 32>}, {transform_indices = @transform_11, window_bounds = array<i64: 1, 1, 64>}, {transform_indices = @transform_12, window_bounds = array<i64: 1, 32, 64>}, {transform_indices = @transform_13, window_bounds = array<i64: 1, 1, 32>}, {transform_indices = @transform_14, window_bounds = array<i64: 1, 1, 32>}, {transform_indices = @transform_15, window_bounds = array<i64: 1, 1, 32>}, {transform_indices = @transform_16, window_bounds = array<i64: 1, 8, 32>}]} {
    %c0_i32 = arith.constant 0 : i32
    %0 = arith.cmpi eq, %arg1, %c0_i32 : i32
    %1 = arith.extui %0 : i1 to i32
    %c0_i32_0 = arith.constant 0 : i32
    %2 = arith.cmpi ne, %1, %c0_i32_0 : i32
    scf.if %2 {
      %c0_70 = arith.constant 0 : index
      %c0_71 = arith.constant 0 : index
      %c0_72 = arith.constant 0 : index
      %133 = vector.load %arg2[%c0_70, %c0_71, %c0_72] : memref<1x8x32xf32, #tpu.memory_space<vmem>>, vector<1x8x32xf32>
      %134 = vector.shape_cast %133 : vector<1x8x32xf32> to vector<8x32xf32>
      %c0_73 = arith.constant 0 : index
      %c0_74 = arith.constant 0 : index
      %c0_75 = arith.constant 0 : index
      %135 = vector.load %arg18[%c0_73, %c0_74, %c0_75] : memref<1x8x32xf32, #tpu.memory_space<vmem>>, vector<1x8x32xf32>
      %136 = vector.shape_cast %135 : vector<1x8x32xf32> to vector<8x32xf32>
      %137 = vector.shape_cast %134 : vector<8x32xf32> to vector<1x8x32xf32>
      tpu.vector_store %arg18[%c0_73, %c0_74, %c0_75], %137 {strides = array<i32>} : memref<1x8x32xf32, #tpu.memory_space<vmem>>, vector<1x8x32xf32>,
    } else {
    }
    %c0 = arith.constant 0 : index
    %c0_1 = arith.constant 0 : index
    %c0_2 = arith.constant 0 : index
    %3 = vector.load %arg18[%c0, %c0_1, %c0_2] : memref<1x8x32xf32, #tpu.memory_space<vmem>>, vector<1x8x32xf32>
    %4 = vector.shape_cast %3 : vector<1x8x32xf32> to vector<8x32xf32>
    %c0_3 = arith.constant 0 : index
    %c0_4 = arith.constant 0 : index
    %c0_5 = arith.constant 0 : index
    %5 = vector.load %arg3[%c0_3, %c0_4, %c0_5] : memref<1x8x32xf32, #tpu.memory_space<vmem>>, vector<1x8x32xf32>
    %6 = vector.shape_cast %5 : vector<1x8x32xf32> to vector<8x32xf32>
    %7 = arith.addf %4, %6 : vector<8x32xf32>
    %c0_6 = arith.constant 0 : index
    %c0_7 = arith.constant 0 : index
    %c0_8 = arith.constant 0 : index
    %8 = vector.load %arg4[%c0_6, %c0_7, %c0_8] : memref<1x64x32xbf16, #tpu.memory_space<vmem>>, vector<1x64x32xbf16>
    %9 = vector.shape_cast %8 : vector<1x64x32xbf16> to vector<64x32xbf16>
    %10 = arith.truncf %7 : vector<8x32xf32> to vector<8x32xbf16>
    %cst = arith.constant dense<0.000000e+00> : vector<8x64xf32>
    %11 = tpu.matmul %10, %9, %cst {dimension_numbers = #tpu.dot_dimension_numbers<[1], [1], [0], [0], [0, 0, 1, 0], [], []>} : vector<8x32xbf16>, vector<64x32xbf16>, vector<8x64xf32> -> vector<8x64xf32>
    %c0_9 = arith.constant 0 : index
    %c0_10 = arith.constant 0 : index
    %c0_11 = arith.constant 0 : index
    %12 = vector.load %arg5[%c0_9, %c0_10, %c0_11] : memref<1x1x64xf32, #tpu.memory_space<vmem>>, vector<1x1x64xf32>
    %13 = vector.shape_cast %12 : vector<1x1x64xf32> to vector<1x64xf32>
    %14 = vector.broadcast %13 : vector<1x64xf32> to vector<8x64xf32>
    %15 = arith.addf %11, %14 : vector<8x64xf32>
    %16 = vector.extract_strided_slice %15 {offsets = [0, 0], sizes = [8, 32], strides = [1, 1]} : vector<8x64xf32> to vector<8x32xf32>
    %17 = vector.extract_strided_slice %15 {offsets = [0, 32], sizes = [8, 32], strides = [1, 1]} : vector<8x64xf32> to vector<8x32xf32>
    %c0_12 = arith.constant 0 : index
    %c0_13 = arith.constant 0 : index
    %c0_14 = arith.constant 0 : index
    %18 = vector.load %arg6[%c0_12, %c0_13, %c0_14] : memref<1x32x32xbf16, #tpu.memory_space<vmem>>, vector<1x32x32xbf16>
    %19 = vector.shape_cast %18 : vector<1x32x32xbf16> to vector<32x32xbf16>
    %20 = arith.truncf %4 : vector<8x32xf32> to vector<8x32xbf16>
    %cst_15 = arith.constant dense<0.000000e+00> : vector<8x32xf32>
    %21 = tpu.matmul %20, %19, %cst_15 {dimension_numbers = #tpu.dot_dimension_numbers<[1], [1], [0], [0], [0, 0, 1, 0], [], []>} : vector<8x32xbf16>, vector<32x32xbf16>, vector<8x32xf32> -> vector<8x32xf32>
    %c0_16 = arith.constant 0 : index
    %c0_17 = arith.constant 0 : index
    %c0_18 = arith.constant 0 : index
    %22 = vector.load %arg7[%c0_16, %c0_17, %c0_18] : memref<1x1x32xf32, #tpu.memory_space<vmem>>, vector<1x1x32xf32>
    %23 = vector.shape_cast %22 : vector<1x1x32xf32> to vector<1x32xf32>
    %24 = vector.broadcast %23 : vector<1x32xf32> to vector<8x32xf32>
    %25 = arith.addf %21, %24 : vector<8x32xf32>
    %26 = vector.shape_cast %16 : vector<8x32xf32> to vector<8x4x8xf32>
    %27 = tpu.transpose %26, [1, 0, 2] : vector<8x4x8xf32> -> vector<4x8x8xf32>
    %28 = arith.truncf %27 : vector<4x8x8xf32> to vector<4x8x8xbf16>
    %29 = vector.shape_cast %17 : vector<8x32xf32> to vector<8x4x8xf32>
    %30 = tpu.transpose %29, [1, 0, 2] : vector<8x4x8xf32> -> vector<4x8x8xf32>
    %31 = arith.truncf %30 : vector<4x8x8xf32> to vector<4x8x8xbf16>
    %32 = vector.shape_cast %25 : vector<8x32xf32> to vector<8x4x8xf32>
    %33 = tpu.transpose %32, [1, 0, 2] : vector<8x4x8xf32> -> vector<4x8x8xf32>
    %34 = arith.truncf %33 : vector<4x8x8xf32> to vector<4x8x8xbf16>
    "tpu.trace_start"() <{level = 10 : i32, message = "hqd,hkd->hqk"}> : () -> ()
    %cst_19 = arith.constant dense<0.000000e+00> : vector<4x8x8xf32>
    %35 = tpu.matmul %28, %31, %cst_19 {dimension_numbers = #tpu.dot_dimension_numbers<[2], [2], [1], [1], [0, 0, 0, 1, 1, 1], [0], [0]>} : vector<4x8x8xbf16>, vector<4x8x8xbf16>, vector<4x8x8xf32> -> vector<4x8x8xf32>
    "tpu.trace_stop"() : () -> ()
    %cst_20 = arith.constant dense<0xFF800000> : vector<4x8xf32>
    %36 = vector.multi_reduction <maximumf>, %35, %cst_20 [2] : vector<4x8x8xf32> to vector<4x8xf32>
    %37 = vector.shape_cast %36 : vector<4x8xf32> to vector<4x8x1xf32>
    %38 = vector.broadcast %37 : vector<4x8x1xf32> to vector<4x8x8xf32>
    %39 = arith.subf %35, %38 : vector<4x8x8xf32>
    %40 = math.exp %39 : vector<4x8x8xf32>
    %cst_21 = arith.constant dense<0.000000e+00> : vector<4x8xf32>
    %41 = vector.multi_reduction <add>, %40, %cst_21 [2] : vector<4x8x8xf32> to vector<4x8xf32>
    %42 = vector.shape_cast %41 : vector<4x8xf32> to vector<4x8x1xf32>
    %43 = tpu.reciprocal %42 {approx = true} : vector<4x8x1xf32> -> vector<4x8x1xf32>
    %44 = vector.broadcast %43 : vector<4x8x1xf32> to vector<4x8x8xf32>
    %45 = arith.mulf %40, %44 : vector<4x8x8xf32>
    %46 = arith.truncf %45 : vector<4x8x8xf32> to vector<4x8x8xbf16>
    "tpu.trace_start"() <{level = 10 : i32, message = "hqk,hkd->hqd"}> : () -> ()
    %cst_22 = arith.constant dense<0.000000e+00> : vector<4x8x8xf32>
    %47 = tpu.matmul %46, %34, %cst_22 {dimension_numbers = #tpu.dot_dimension_numbers<[2], [1], [1], [2], [0, 0, 0, 1, 1, 2], [0], [0]>} : vector<4x8x8xbf16>, vector<4x8x8xbf16>, vector<4x8x8xf32> -> vector<4x8x8xf32>
    "tpu.trace_stop"() : () -> ()
    %48 = tpu.transpose %47, [1, 0, 2] : vector<4x8x8xf32> -> vector<8x4x8xf32>
    %49 = vector.shape_cast %48 : vector<8x4x8xf32> to vector<8x32xf32>
    %c0_23 = arith.constant 0 : index
    %c0_24 = arith.constant 0 : index
    %c0_25 = arith.constant 0 : index
    %50 = vector.load %arg8[%c0_23, %c0_24, %c0_25] : memref<1x32x32xbf16, #tpu.memory_space<vmem>>, vector<1x32x32xbf16>
    %51 = vector.shape_cast %50 : vector<1x32x32xbf16> to vector<32x32xbf16>
    %52 = arith.truncf %49 : vector<8x32xf32> to vector<8x32xbf16>
    %cst_26 = arith.constant dense<0.000000e+00> : vector<8x32xf32>
    %53 = tpu.matmul %52, %51, %cst_26 {dimension_numbers = #tpu.dot_dimension_numbers<[1], [1], [0], [0], [0, 0, 1, 0], [], []>} : vector<8x32xbf16>, vector<32x32xbf16>, vector<8x32xf32> -> vector<8x32xf32>
    %c0_27 = arith.constant 0 : index
    %c0_28 = arith.constant 0 : index
    %c0_29 = arith.constant 0 : index
    %54 = vector.load %arg9[%c0_27, %c0_28, %c0_29] : memref<1x1x32xf32, #tpu.memory_space<vmem>>, vector<1x1x32xf32>
    %55 = vector.shape_cast %54 : vector<1x1x32xf32> to vector<1x32xf32>
    %56 = vector.broadcast %55 : vector<1x32xf32> to vector<8x32xf32>
    %57 = arith.addf %53, %56 : vector<8x32xf32>
    %58 = arith.addf %4, %57 : vector<8x32xf32>
    %c0_30 = arith.constant 0 : index
    %c0_31 = arith.constant 0 : index
    %c0_32 = arith.constant 0 : index
    %59 = vector.load %arg10[%c0_30, %c0_31, %c0_32] : memref<1x1x32xf32, #tpu.memory_space<vmem>>, vector<1x1x32xf32>
    %60 = vector.shape_cast %59 : vector<1x1x32xf32> to vector<1x32xf32>
    %c0_33 = arith.constant 0 : index
    %c0_34 = arith.constant 0 : index
    %c0_35 = arith.constant 0 : index
    %61 = vector.load %arg11[%c0_33, %c0_34, %c0_35] : memref<1x1x32xf32, #tpu.memory_space<vmem>>, vector<1x1x32xf32>
    %62 = vector.shape_cast %61 : vector<1x1x32xf32> to vector<1x32xf32>
    %cst_36 = arith.constant dense<0.000000e+00> : vector<8xf32>
    %63 = vector.multi_reduction <add>, %58, %cst_36 [1] : vector<8x32xf32> to vector<8xf32>
    %64 = vector.shape_cast %63 : vector<8xf32> to vector<8x1xf32>
    %cst_37 = arith.constant 3.200000e+01 : f32
    %65 = vector.broadcast %cst_37 : f32 to vector<8x1xf32>
    %66 = arith.divf %64, %65 : vector<8x1xf32>
    %67 = vector.broadcast %66 : vector<8x1xf32> to vector<8x32xf32>
    %68 = arith.subf %58, %67 : vector<8x32xf32>
    %69 = arith.mulf %68, %68 : vector<8x32xf32>
    %cst_38 = arith.constant dense<0.000000e+00> : vector<8xf32>
    %70 = vector.multi_reduction <add>, %69, %cst_38 [1] : vector<8x32xf32> to vector<8xf32>
    %71 = vector.shape_cast %70 : vector<8xf32> to vector<8x1xf32>
    %cst_39 = arith.constant 3.200000e+01 : f32
    %72 = vector.broadcast %cst_39 : f32 to vector<8x1xf32>
    %73 = arith.divf %71, %72 : vector<8x1xf32>
    %74 = vector.broadcast %66 : vector<8x1xf32> to vector<8x32xf32>
    %75 = arith.subf %58, %74 : vector<8x32xf32>
    %cst_40 = arith.constant 9.99999974E-6 : f32
    %76 = vector.broadcast %cst_40 : f32 to vector<8x1xf32>
    %77 = arith.addf %73, %76 : vector<8x1xf32>
    %78 = math.rsqrt %77 : vector<8x1xf32>
    %79 = vector.broadcast %78 : vector<8x1xf32> to vector<8x32xf32>
    %80 = arith.mulf %75, %79 : vector<8x32xf32>
    %81 = vector.broadcast %60 : vector<1x32xf32> to vector<8x32xf32>
    %82 = arith.mulf %80, %81 : vector<8x32xf32>
    %83 = vector.broadcast %62 : vector<1x32xf32> to vector<8x32xf32>
    %84 = arith.addf %82, %83 : vector<8x32xf32>
    %c0_41 = arith.constant 0 : index
    %c0_42 = arith.constant 0 : index
    %c0_43 = arith.constant 0 : index
    %85 = vector.load %arg12[%c0_41, %c0_42, %c0_43] : memref<1x64x32xbf16, #tpu.memory_space<vmem>>, vector<1x64x32xbf16>
    %86 = vector.shape_cast %85 : vector<1x64x32xbf16> to vector<64x32xbf16>
    %87 = arith.truncf %84 : vector<8x32xf32> to vector<8x32xbf16>
    %cst_44 = arith.constant dense<0.000000e+00> : vector<8x64xf32>
    %88 = tpu.matmul %87, %86, %cst_44 {dimension_numbers = #tpu.dot_dimension_numbers<[1], [1], [0], [0], [0, 0, 1, 0], [], []>} : vector<8x32xbf16>, vector<64x32xbf16>, vector<8x64xf32> -> vector<8x64xf32>
    %c0_45 = arith.constant 0 : index
    %c0_46 = arith.constant 0 : index
    %c0_47 = arith.constant 0 : index
    %89 = vector.load %arg13[%c0_45, %c0_46, %c0_47] : memref<1x1x64xf32, #tpu.memory_space<vmem>>, vector<1x1x64xf32>
    %90 = vector.shape_cast %89 : vector<1x1x64xf32> to vector<1x64xf32>
    %91 = vector.broadcast %90 : vector<1x64xf32> to vector<8x64xf32>
    %92 = arith.addf %88, %91 : vector<8x64xf32>
    %cst_48 = arith.constant 0.000000e+00 : f32
    %93 = vector.broadcast %cst_48 : f32 to vector<8x64xf32>
    %94 = arith.maximumf %92, %93 : vector<8x64xf32>
    %c0_49 = arith.constant 0 : index
    %c0_50 = arith.constant 0 : index
    %c0_51 = arith.constant 0 : index
    %95 = vector.load %arg14[%c0_49, %c0_50, %c0_51] : memref<1x32x64xbf16, #tpu.memory_space<vmem>>, vector<1x32x64xbf16>
    %96 = vector.shape_cast %95 : vector<1x32x64xbf16> to vector<32x64xbf16>
    %97 = arith.truncf %94 : vector<8x64xf32> to vector<8x64xbf16>
    %cst_52 = arith.constant dense<0.000000e+00> : vector<8x32xf32>
    %98 = tpu.matmul %97, %96, %cst_52 {dimension_numbers = #tpu.dot_dimension_numbers<[1], [1], [0], [0], [0, 0, 1, 0], [], []>} : vector<8x64xbf16>, vector<32x64xbf16>, vector<8x32xf32> -> vector<8x32xf32>
    %c0_53 = arith.constant 0 : index
    %c0_54 = arith.constant 0 : index
    %c0_55 = arith.constant 0 : index
    %99 = vector.load %arg15[%c0_53, %c0_54, %c0_55] : memref<1x1x32xf32, #tpu.memory_space<vmem>>, vector<1x1x32xf32>
    %100 = vector.shape_cast %99 : vector<1x1x32xf32> to vector<1x32xf32>
    %101 = vector.broadcast %100 : vector<1x32xf32> to vector<8x32xf32>
    %102 = arith.addf %98, %101 : vector<8x32xf32>
    %103 = arith.addf %84, %102 : vector<8x32xf32>
    %c0_56 = arith.constant 0 : index
    %c0_57 = arith.constant 0 : index
    %c0_58 = arith.constant 0 : index
    %104 = vector.load %arg16[%c0_56, %c0_57, %c0_58] : memref<1x1x32xf32, #tpu.memory_space<vmem>>, vector<1x1x32xf32>
    %105 = vector.shape_cast %104 : vector<1x1x32xf32> to vector<1x32xf32>
    %c0_59 = arith.constant 0 : index
    %c0_60 = arith.constant 0 : index
    %c0_61 = arith.constant 0 : index
    %106 = vector.load %arg17[%c0_59, %c0_60, %c0_61] : memref<1x1x32xf32, #tpu.memory_space<vmem>>, vector<1x1x32xf32>
    %107 = vector.shape_cast %106 : vector<1x1x32xf32> to vector<1x32xf32>
    %cst_62 = arith.constant dense<0.000000e+00> : vector<8xf32>
    %108 = vector.multi_reduction <add>, %103, %cst_62 [1] : vector<8x32xf32> to vector<8xf32>
    %109 = vector.shape_cast %108 : vector<8xf32> to vector<8x1xf32>
    %cst_63 = arith.constant 3.200000e+01 : f32
    %110 = vector.broadcast %cst_63 : f32 to vector<8x1xf32>
    %111 = arith.divf %109, %110 : vector<8x1xf32>
    %112 = vector.broadcast %111 : vector<8x1xf32> to vector<8x32xf32>
    %113 = arith.subf %103, %112 : vector<8x32xf32>
    %114 = arith.mulf %113, %113 : vector<8x32xf32>
    %cst_64 = arith.constant dense<0.000000e+00> : vector<8xf32>
    %115 = vector.multi_reduction <add>, %114, %cst_64 [1] : vector<8x32xf32> to vector<8xf32>
    %116 = vector.shape_cast %115 : vector<8xf32> to vector<8x1xf32>
    %cst_65 = arith.constant 3.200000e+01 : f32
    %117 = vector.broadcast %cst_65 : f32 to vector<8x1xf32>
    %118 = arith.divf %116, %117 : vector<8x1xf32>
    %119 = vector.broadcast %111 : vector<8x1xf32> to vector<8x32xf32>
    %120 = arith.subf %103, %119 : vector<8x32xf32>
    %cst_66 = arith.constant 9.99999974E-6 : f32
    %121 = vector.broadcast %cst_66 : f32 to vector<8x1xf32>
    %122 = arith.addf %118, %121 : vector<8x1xf32>
    %123 = math.rsqrt %122 : vector<8x1xf32>
    %124 = vector.broadcast %123 : vector<8x1xf32> to vector<8x32xf32>
    %125 = arith.mulf %120, %124 : vector<8x32xf32>
    %126 = vector.broadcast %105 : vector<1x32xf32> to vector<8x32xf32>
    %127 = arith.mulf %125, %126 : vector<8x32xf32>
    %128 = vector.broadcast %107 : vector<1x32xf32> to vector<8x32xf32>
    %129 = arith.addf %127, %128 : vector<8x32xf32>
    %c0_67 = arith.constant 0 : index
    %c0_68 = arith.constant 0 : index
    %c0_69 = arith.constant 0 : index
    %130 = vector.load %arg18[%c0_67, %c0_68, %c0_69] : memref<1x8x32xf32, #tpu.memory_space<vmem>>, vector<1x8x32xf32>
    %131 = vector.shape_cast %130 : vector<1x8x32xf32> to vector<8x32xf32>
    %132 = vector.shape_cast %129 : vector<8x32xf32> to vector<1x8x32xf32>
    tpu.vector_store %arg18[%c0_67, %c0_68, %c0_69], %132 {strides = array<i32>} : memref<1x8x32xf32, #tpu.memory_space<vmem>>, vector<1x8x32xf32>,
    return
  }
  func.func @transform_0(%arg0: i32, %arg1: i32) -> (i32, i32, i32) {
    %c0_i32 = arith.constant 0 : i32
    %c0_i32_0 = arith.constant 0 : i32
    %c0_i32_1 = arith.constant 0 : i32
    return %arg0, %c0_i32, %c0_i32_0 : i32, i32, i32
  }
  func.func @transform_1(%arg0: i32, %arg1: i32) -> (i32, i32, i32) {
    %c0_i32 = arith.constant 0 : i32
    %c0_i32_0 = arith.constant 0 : i32
    %c0_i32_1 = arith.constant 0 : i32
    return %arg0, %c0_i32, %c0_i32_0 : i32, i32, i32
  }
  func.func @transform_2(%arg0: i32, %arg1: i32) -> (i32, i32, i32) {
    %c0_i32 = arith.constant 0 : i32
    %c0_i32_0 = arith.constant 0 : i32
    %c0_i32_1 = arith.constant 0 : i32
    return %arg1, %c0_i32, %c0_i32_0 : i32, i32, i32
  }
  func.func @transform_3(%arg0: i32, %arg1: i32) -> (i32, i32, i32) {
    %c0_i32 = arith.constant 0 : i32
    %c0_i32_0 = arith.constant 0 : i32
    %c0_i32_1 = arith.constant 0 : i32
    return %arg1, %c0_i32, %c0_i32_0 : i32, i32, i32
  }
  func.func @transform_4(%arg0: i32, %arg1: i32) -> (i32, i32, i32) {
    %c0_i32 = arith.constant 0 : i32
    %c0_i32_0 = arith.constant 0 : i32
    %c0_i32_1 = arith.constant 0 : i32
    return %arg1, %c0_i32, %c0_i32_0 : i32, i32, i32
  }
  func.func @transform_5(%arg0: i32, %arg1: i32) -> (i32, i32, i32) {
    %c0_i32 = arith.constant 0 : i32
    %c0_i32_0 = arith.constant 0 : i32
    %c0_i32_1 = arith.constant 0 : i32
    return %arg1, %c0_i32, %c0_i32_0 : i32, i32, i32
  }
  func.func @transform_6(%arg0: i32, %arg1: i32) -> (i32, i32, i32) {
    %c0_i32 = arith.constant 0 : i32
    %c0_i32_0 = arith.constant 0 : i32
    %c0_i32_1 = arith.constant 0 : i32
    return %arg1, %c0_i32, %c0_i32_0 : i32, i32, i32
  }
  func.func @transform_7(%arg0: i32, %arg1: i32) -> (i32, i32, i32) {
    %c0_i32 = arith.constant 0 : i32
    %c0_i32_0 = arith.constant 0 : i32
    %c0_i32_1 = arith.constant 0 : i32
    return %arg1, %c0_i32, %c0_i32_0 : i32, i32, i32
  }
  func.func @transform_8(%arg0: i32, %arg1: i32) -> (i32, i32, i32) {
    %c0_i32 = arith.constant 0 : i32
    %c0_i32_0 = arith.constant 0 : i32
    %c0_i32_1 = arith.constant 0 : i32
    return %arg1, %c0_i32, %c0_i32_0 : i32, i32, i32
  }
  func.func @transform_9(%arg0: i32, %arg1: i32) -> (i32, i32, i32) {
    %c0_i32 = arith.constant 0 : i32
    %c0_i32_0 = arith.constant 0 : i32
    %c0_i32_1 = arith.constant 0 : i32
    return %arg1, %c0_i32, %c0_i32_0 : i32, i32, i32
  }
  func.func @transform_10(%arg0: i32, %arg1: i32) -> (i32, i32, i32) {
    %c0_i32 = arith.constant 0 : i32
    %c0_i32_0 = arith.constant 0 : i32
    %c0_i32_1 = arith.constant 0 : i32
    return %arg1, %c0_i32, %c0_i32_0 : i32, i32, i32
  }
  func.func @transform_11(%arg0: i32, %arg1: i32) -> (i32, i32, i32) {
    %c0_i32 = arith.constant 0 : i32
    %c0_i32_0 = arith.constant 0 : i32
    %c0_i32_1 = arith.constant 0 : i32
    return %arg1, %c0_i32, %c0_i32_0 : i32, i32, i32
  }
  func.func @transform_12(%arg0: i32, %arg1: i32) -> (i32, i32, i32) {
    %c0_i32 = arith.constant 0 : i32
    %c0_i32_0 = arith.constant 0 : i32
    %c0_i32_1 = arith.constant 0 : i32
    return %arg1, %c0_i32, %c0_i32_0 : i32, i32, i32
  }
  func.func @transform_13(%arg0: i32, %arg1: i32) -> (i32, i32, i32) {
    %c0_i32 = arith.constant 0 : i32
    %c0_i32_0 = arith.constant 0 : i32
    %c0_i32_1 = arith.constant 0 : i32
    return %arg1, %c0_i32, %c0_i32_0 : i32, i32, i32
  }
  func.func @transform_14(%arg0: i32, %arg1: i32) -> (i32, i32, i32) {
    %c0_i32 = arith.constant 0 : i32
    %c0_i32_0 = arith.constant 0 : i32
    %c0_i32_1 = arith.constant 0 : i32
    return %arg1, %c0_i32, %c0_i32_0 : i32, i32, i32
  }
  func.func @transform_15(%arg0: i32, %arg1: i32) -> (i32, i32, i32) {
    %c0_i32 = arith.constant 0 : i32
    %c0_i32_0 = arith.constant 0 : i32
    %c0_i32_1 = arith.constant 0 : i32
    return %arg1, %c0_i32, %c0_i32_0 : i32, i32, i32
  }
  func.func @transform_16(%arg0: i32, %arg1: i32) -> (i32, i32, i32) {
    %c0_i32 = arith.constant 0 : i32
    %c0_i32_0 = arith.constant 0 : i32
    %c0_i32_1 = arith.constant 0 : i32
    return %arg0, %c0_i32, %c0_i32_0 : i32, i32, i32
  }
}

</mosaic_0001>

<llo_original>
// kernel: tpu_custom_call.1
$region0: #{tpu_custom_call.1}
  #allocation0 [shape = 'u32[]', space=smem, size = 0x4, offset = 0x4, fixed_abs, tag = 'smem constant byte address 0x4 - core index']
  #allocation1 [shape = 'u32[144,128]{1,0:T(1,128)}', space=vmem, size = 0x12000, scoped, tag = 'internal scratch']
  %s0 = inlined_call_operand.vmem [shape: f32[2,8,32], index: 0, kind: input, shape index: {}]
  %s1 = inlined_call_operand.vmem [shape: f32[2,8,32], index: 1, kind: input, shape index: {}]
  %s2 = inlined_call_operand.vmem [shape: bf16[2,64,32], index: 2, kind: input, shape index: {}]
  %s3 = inlined_call_operand.vmem [shape: f32[2,1,64], index: 3, kind: input, shape index: {}]
  %s4 = inlined_call_operand.vmem [shape: bf16[2,32,32], index: 4, kind: input, shape index: {}]
  %s5 = inlined_call_operand.vmem [shape: f32[2,1,32], index: 5, kind: input, shape index: {}]
  %s6 = inlined_call_operand.vmem [shape: bf16[2,32,32], index: 6, kind: input, shape index: {}]
  %s7 = inlined_call_operand.vmem [shape: f32[2,1,32], index: 7, kind: input, shape index: {}]
  %s8 = inlined_call_operand.vmem [shape: f32[2,1,32], index: 8, kind: input, shape index: {}]
  %s9 = inlined_call_operand.vmem [shape: f32[2,1,32], index: 9, kind: input, shape index: {}]
  %s10 = inlined_call_operand.vmem [shape: bf16[2,64,32], index: 10, kind: input, shape index: {}]
  %s11 = inlined_call_operand.vmem [shape: f32[2,1,64], index: 11, kind: input, shape index: {}]
  %s12 = inlined_call_operand.vmem [shape: bf16[2,32,64], index: 12, kind: input, shape index: {}]
  %s13 = inlined_call_operand.vmem [shape: f32[2,1,32], index: 13, kind: input, shape index: {}]
  %s14 = inlined_call_operand.vmem [shape: f32[2,1,32], index: 14, kind: input, shape index: {}]
  %s15 = inlined_call_operand.vmem [shape: f32[2,1,32], index: 15, kind: input, shape index: {}]
  %s16 = inlined_call_operand.hbm [shape: f32[2,8,32], index: 16, kind: output, shape index: {}]
  %s17 = sld [smem:[#allocation0]]
  $region101: #{tpu_custom_call.1} parent=0
    _
  %s19 = ssub.s32 1, %s17
  %s20 = scalar_select 0, %s19, %s17
  $region1: #{tpu_custom_call.1} parent=0
    #allocation2 [shape = 'u8[8192]{0}', space=vmem, size = 0x2000, scoped, tag = 'output window, operand 0']
    #allocation3 [shape = 's32[2]{0}', space=sflag, size = 0x8, scoped, tag = 'scoped memory for tpu_custom_call.1']
    %21 = vsyncpa [#allocation3], 0
    %s22 = scalar_lea.sflag [#allocation3], 1
    %23 = vsyncpa %s22, 0
    loop: start=0, step=1, limit=6
    $region2: #{tpu_custom_call.1} parent=1 // loop_pre_header
      _
    $region3: #{tpu_custom_call.1} parent=1 // loop_header
      %s25 = sphi 0, %s29
      %p26 = scmp.ge.s32.totalorder %s25, 6
      %s32 = sphi 0, %s44
      %s33 = sphi 0, %s40
      %s34 = sphi 0, %s32
      %s35 = sphi 0, %s33
      %s36 = sphi 0, %s34
      %s37 = sphi 0, %s35
      %s47 = sphi 0, %s49
      %s50 = sphi 0, %s47
      %s51 = sphi 0, %s50
      %s67 = sphi 0, %s51
      %s73 = sphi 0, %s75
      %s76 = sphi 0, %s73
      %s77 = sphi 0, %s76
      %s93 = sphi 0, %s77
      %s99 = sphi 0, %s101
      %s102 = sphi 0, %s99
      %s103 = sphi 0, %s102
      %s119 = sphi 0, %s103
      %s125 = sphi 0, %s127
      %s128 = sphi 0, %s125
      %s129 = sphi 0, %s128
      %s145 = sphi 0, %s129
      %s151 = sphi 0, %s153
      %s154 = sphi 0, %s151
      %s155 = sphi 0, %s154
      %s171 = sphi 0, %s155
      %s177 = sphi 0, %s179
      %s180 = sphi 0, %s177
      %s181 = sphi 0, %s180
      %s197 = sphi 0, %s181
      %s203 = sphi 0, %s205
      %s206 = sphi 0, %s203
      %s207 = sphi 0, %s206
      %s223 = sphi 0, %s207
      %s229 = sphi 0, %s231
      %s232 = sphi 0, %s229
      %s233 = sphi 0, %s232
      %s249 = sphi 0, %s233
      %s255 = sphi 0, %s257
      %s258 = sphi 0, %s255
      %s259 = sphi 0, %s258
      %s275 = sphi 0, %s259
      %s281 = sphi 0, %s283
      %s284 = sphi 0, %s281
      %s285 = sphi 0, %s284
      %s301 = sphi 0, %s285
      %s307 = sphi 0, %s309
      %s310 = sphi 0, %s307
      %s311 = sphi 0, %s310
      %s327 = sphi 0, %s311
      %s333 = sphi 0, %s335
      %s336 = sphi 0, %s333
      %s337 = sphi 0, %s336
      %s353 = sphi 0, %s337
      %s359 = sphi 0, %s361
      %s362 = sphi 0, %s359
      %s363 = sphi 0, %s362
      %s379 = sphi 0, %s363
      %s385 = sphi 0, %s387
      %s388 = sphi 0, %s385
      %s389 = sphi 0, %s388
      %s405 = sphi 0, %s389
      %s411 = sphi 0, %s413
      %s414 = sphi 0, %s411
      %s415 = sphi 0, %s414
      %s431 = sphi 0, %s415
      %s437 = sphi 0, %s439
      %s440 = sphi 0, %s437
      %s441 = sphi 0, %s440
      %s457 = sphi 0, %s441
      %s463 = sphi 0, %s465
      %s466 = sphi 0, %s463
      %s467 = sphi 0, %s466
      %s483 = sphi 0, %s467
    $region4: #{tpu_custom_call.1} parent=1 // loop_header_branch
      %28 = sbr.rel (%p26) target = $region8
    $region5: #{tpu_custom_call.1} parent=1 // loop_body
      %s30 = ssub.s32 %s25, 1
      %s31 = ssub.s32 %s25, 2
      %s38 = sadd.s32 1, %s33
      %p39 = scmp.ge.s32.totalorder %s38, 2
      %s40 = scalar_select %p39, 0, %s38
      %s41 = sadd.s32 1, %s32
      %s42 = scalar_select %p39, %s41, %s32
      %p43 = scmp.ge.s32.totalorder %s42, 2
      %s44 = scalar_select %p43, 0, %s42
      %s45 = ssub.s32 %s32, %s44
      %p46 = scmp.eq.s32.totalorder %s45, 0
      %s48 = sadd.s32 %s47, 1
      %s49 = scalar_select %p46, %s47, %s48
      %p52 = pneg %p46
      %p53 = scmp.eq.s32.totalorder %s25, 3
      %p54 = por %p52, %p53
      %p55 = scmp.ne.s32.totalorder %s47, %s50
      %p56 = scmp.eq.s32.totalorder %s25, 0
      %p57 = por %p55, %p56
      %p58 = scmp.ne.s32.totalorder %s47, %s50
      %p59 = scmp.eq.s32.totalorder %s30, 3
      %p60 = por %p58, %p59
      %p61 = scmp.ne.s32.totalorder %s50, %s51
      %p62 = scmp.eq.s32.totalorder %s30, 0
      %p63 = por %p61, %p62
      %p64 = scmp.ne.s32.totalorder %s50, %s51
      %p65 = scmp.eq.s32.totalorder %s31, 3
      %p66 = por %p64, %p65
      %p68 = scmp.ne.s32.totalorder %s51, %s67
      %p69 = scmp.eq.s32.totalorder %s31, 0
      %p70 = por %p68, %p69
      %s71 = ssub.s32 %s32, %s44
      %p72 = scmp.eq.s32.totalorder %s71, 0
      %s74 = sadd.s32 %s73, 1
      %s75 = scalar_select %p72, %s73, %s74
      %p78 = pneg %p72
      %p79 = scmp.eq.s32.totalorder %s25, 3
      %p80 = por %p78, %p79
      %p81 = scmp.ne.s32.totalorder %s73, %s76
      %p82 = scmp.eq.s32.totalorder %s25, 0
      %p83 = por %p81, %p82
      %p84 = scmp.ne.s32.totalorder %s73, %s76
      %p85 = scmp.eq.s32.totalorder %s30, 3
      %p86 = por %p84, %p85
      %p87 = scmp.ne.s32.totalorder %s76, %s77
      %p88 = scmp.eq.s32.totalorder %s30, 0
      %p89 = por %p87, %p88
      %p90 = scmp.ne.s32.totalorder %s76, %s77
      %p91 = scmp.eq.s32.totalorder %s31, 3
      %p92 = por %p90, %p91
      %p94 = scmp.ne.s32.totalorder %s77, %s93
      %p95 = scmp.eq.s32.totalorder %s31, 0
      %p96 = por %p94, %p95
      %s97 = ssub.s32 %s33, %s40
      %p98 = scmp.eq.s32.totalorder %s97, 0
      %s100 = sadd.s32 %s99, 1
      %s101 = scalar_select %p98, %s99, %s100
      %p104 = pneg %p98
      %p105 = scmp.eq.s32.totalorder %s25, 3
      %p106 = por %p104, %p105
      %p107 = scmp.ne.s32.totalorder %s99, %s102
      %p108 = scmp.eq.s32.totalorder %s25, 0
      %p109 = por %p107, %p108
      %p110 = scmp.ne.s32.totalorder %s99, %s102
      %p111 = scmp.eq.s32.totalorder %s30, 3
      %p112 = por %p110, %p111
      %p113 = scmp.ne.s32.totalorder %s102, %s103
      %p114 = scmp.eq.s32.totalorder %s30, 0
      %p115 = por %p113, %p114
      %p116 = scmp.ne.s32.totalorder %s102, %s103
      %p117 = scmp.eq.s32.totalorder %s31, 3
      %p118 = por %p116, %p117
      %p120 = scmp.ne.s32.totalorder %s103, %s119
      %p121 = scmp.eq.s32.totalorder %s31, 0
      %p122 = por %p120, %p121
      %s123 = ssub.s32 %s33, %s40
      %p124 = scmp.eq.s32.totalorder %s123, 0
      %s126 = sadd.s32 %s125, 1
      %s127 = scalar_select %p124, %s125, %s126
      %p130 = pneg %p124
      %p131 = scmp.eq.s32.totalorder %s25, 3
      %p132 = por %p130, %p131
      %p133 = scmp.ne.s32.totalorder %s125, %s128
      %p134 = scmp.eq.s32.totalorder %s25, 0
      %p135 = por %p133, %p134
      %p136 = scmp.ne.s32.totalorder %s125, %s128
      %p137 = scmp.eq.s32.totalorder %s30, 3
      %p138 = por %p136, %p137
      %p139 = scmp.ne.s32.totalorder %s128, %s129
      %p140 = scmp.eq.s32.totalorder %s30, 0
      %p141 = por %p139, %p140
      %p142 = scmp.ne.s32.totalorder %s128, %s129
      %p143 = scmp.eq.s32.totalorder %s31, 3
      %p144 = por %p142, %p143
      %p146 = scmp.ne.s32.totalorder %s129, %s145
      %p147 = scmp.eq.s32.totalorder %s31, 0
      %p148 = por %p146, %p147
      %s149 = ssub.s32 %s33, %s40
      %p150 = scmp.eq.s32.totalorder %s149, 0
      %s152 = sadd.s32 %s151, 1
      %s153 = scalar_select %p150, %s151, %s152
      %p156 = pneg %p150
      %p157 = scmp.eq.s32.totalorder %s25, 3
      %p158 = por %p156, %p157
      %p159 = scmp.ne.s32.totalorder %s151, %s154
      %p160 = scmp.eq.s32.totalorder %s25, 0
      %p161 = por %p159, %p160
      %p162 = scmp.ne.s32.totalorder %s151, %s154
      %p163 = scmp.eq.s32.totalorder %s30, 3
      %p164 = por %p162, %p163
      %p165 = scmp.ne.s32.totalorder %s154, %s155
      %p166 = scmp.eq.s32.totalorder %s30, 0
      %p167 = por %p165, %p166
      %p168 = scmp.ne.s32.totalorder %s154, %s155
      %p169 = scmp.eq.s32.totalorder %s31, 3
      %p170 = por %p168, %p169
      %p172 = scmp.ne.s32.totalorder %s155, %s171
      %p173 = scmp.eq.s32.totalorder %s31, 0
      %p174 = por %p172, %p173
      %s175 = ssub.s32 %s33, %s40
      %p176 = scmp.eq.s32.totalorder %s175, 0
      %s178 = sadd.s32 %s177, 1
      %s179 = scalar_select %p176, %s177, %s178
      %p182 = pneg %p176
      %p183 = scmp.eq.s32.totalorder %s25, 3
      %p184 = por %p182, %p183
      %p185 = scmp.ne.s32.totalorder %s177, %s180
      %p186 = scmp.eq.s32.totalorder %s25, 0
      %p187 = por %p185, %p186
      %p188 = scmp.ne.s32.totalorder %s177, %s180
      %p189 = scmp.eq.s32.totalorder %s30, 3
      %p190 = por %p188, %p189
      %p191 = scmp.ne.s32.totalorder %s180, %s181
      %p192 = scmp.eq.s32.totalorder %s30, 0
      %p193 = por %p191, %p192
      %p194 = scmp.ne.s32.totalorder %s180, %s181
      %p195 = scmp.eq.s32.totalorder %s31, 3
      %p196 = por %p194, %p195
      %p198 = scmp.ne.s32.totalorder %s181, %s197
      %p199 = scmp.eq.s32.totalorder %s31, 0
      %p200 = por %p198, %p199
      %s201 = ssub.s32 %s33, %s40
      %p202 = scmp.eq.s32.totalorder %s201, 0
      %s204 = sadd.s32 %s203, 1
      %s205 = scalar_select %p202, %s203, %s204
      %p208 = pneg %p202
      %p209 = scmp.eq.s32.totalorder %s25, 3
      %p210 = por %p208, %p209
      %p211 = scmp.ne.s32.totalorder %s203, %s206
      %p212 = scmp.eq.s32.totalorder %s25, 0
      %p213 = por %p211, %p212
      %p214 = scmp.ne.s32.totalorder %s203, %s206
      %p215 = scmp.eq.s32.totalorder %s30, 3
      %p216 = por %p214, %p215
      %p217 = scmp.ne.s32.totalorder %s206, %s207
      %p218 = scmp.eq.s32.totalorder %s30, 0
      %p219 = por %p217, %p218
      %p220 = scmp.ne.s32.totalorder %s206, %s207
      %p221 = scmp.eq.s32.totalorder %s31, 3
      %p222 = por %p220, %p221
      %p224 = scmp.ne.s32.totalorder %s207, %s223
      %p225 = scmp.eq.s32.totalorder %s31, 0
      %p226 = por %p224, %p225
      %s227 = ssub.s32 %s33, %s40
      %p228 = scmp.eq.s32.totalorder %s227, 0
      %s230 = sadd.s32 %s229, 1
      %s231 = scalar_select %p228, %s229, %s230
      %p234 = pneg %p228
      %p235 = scmp.eq.s32.totalorder %s25, 3
      %p236 = por %p234, %p235
      %p237 = scmp.ne.s32.totalorder %s229, %s232
      %p238 = scmp.eq.s32.totalorder %s25, 0
      %p239 = por %p237, %p238
      %p240 = scmp.ne.s32.totalorder %s229, %s232
      %p241 = scmp.eq.s32.totalorder %s30, 3
      %p242 = por %p240, %p241
      %p243 = scmp.ne.s32.totalorder %s232, %s233
      %p244 = scmp.eq.s32.totalorder %s30, 0
      %p245 = por %p243, %p244
      %p246 = scmp.ne.s32.totalorder %s232, %s233
      %p247 = scmp.eq.s32.totalorder %s31, 3
      %p248 = por %p246, %p247
      %p250 = scmp.ne.s32.totalorder %s233, %s249
      %p251 = scmp.eq.s32.totalorder %s31, 0
      %p252 = por %p250, %p251
      %s253 = ssub.s32 %s33, %s40
      %p254 = scmp.eq.s32.totalorder %s253, 0
      %s256 = sadd.s32 %s255, 1
      %s257 = scalar_select %p254, %s255, %s256
      %p260 = pneg %p254
      %p261 = scmp.eq.s32.totalorder %s25, 3
      %p262 = por %p260, %p261
      %p263 = scmp.ne.s32.totalorder %s255, %s258
      %p264 = scmp.eq.s32.totalorder %s25, 0
      %p265 = por %p263, %p264
      %p266 = scmp.ne.s32.totalorder %s255, %s258
      %p267 = scmp.eq.s32.totalorder %s30, 3
      %p268 = por %p266, %p267
      %p269 = scmp.ne.s32.totalorder %s258, %s259
      %p270 = scmp.eq.s32.totalorder %s30, 0
      %p271 = por %p269, %p270
      %p272 = scmp.ne.s32.totalorder %s258, %s259
      %p273 = scmp.eq.s32.totalorder %s31, 3
      %p274 = por %p272, %p273
      %p276 = scmp.ne.s32.totalorder %s259, %s275
      %p277 = scmp.eq.s32.totalorder %s31, 0
      %p278 = por %p276, %p277
      %s279 = ssub.s32 %s33, %s40
      %p280 = scmp.eq.s32.totalorder %s279, 0
      %s282 = sadd.s32 %s281, 1
      %s283 = scalar_select %p280, %s281, %s282
      %p286 = pneg %p280
      %p287 = scmp.eq.s32.totalorder %s25, 3
      %p288 = por %p286, %p287
      %p289 = scmp.ne.s32.totalorder %s281, %s284
      %p290 = scmp.eq.s32.totalorder %s25, 0
      %p291 = por %p289, %p290
      %p292 = scmp.ne.s32.totalorder %s281, %s284
      %p293 = scmp.eq.s32.totalorder %s30, 3
      %p294 = por %p292, %p293
      %p295 = scmp.ne.s32.totalorder %s284, %s285
      %p296 = scmp.eq.s32.totalorder %s30, 0
      %p297 = por %p295, %p296
      %p298 = scmp.ne.s32.totalorder %s284, %s285
      %p299 = scmp.eq.s32.totalorder %s31, 3
      %p300 = por %p298, %p299
      %p302 = scmp.ne.s32.totalorder %s285, %s301
      %p303 = scmp.eq.s32.totalorder %s31, 0
      %p304 = por %p302, %p303
      %s305 = ssub.s32 %s33, %s40
      %p306 = scmp.eq.s32.totalorder %s305, 0
      %s308 = sadd.s32 %s307, 1
      %s309 = scalar_select %p306, %s307, %s308
      %p312 = pneg %p306
      %p313 = scmp.eq.s32.totalorder %s25, 3
      %p314 = por %p312, %p313
      %p315 = scmp.ne.s32.totalorder %s307, %s310
      %p316 = scmp.eq.s32.totalorder %s25, 0
      %p317 = por %p315, %p316
      %p318 = scmp.ne.s32.totalorder %s307, %s310
      %p319 = scmp.eq.s32.totalorder %s30, 3
      %p320 = por %p318, %p319
      %p321 = scmp.ne.s32.totalorder %s310, %s311
      %p322 = scmp.eq.s32.totalorder %s30, 0
      %p323 = por %p321, %p322
      %p324 = scmp.ne.s32.totalorder %s310, %s311
      %p325 = scmp.eq.s32.totalorder %s31, 3
      %p326 = por %p324, %p325
      %p328 = scmp.ne.s32.totalorder %s311, %s327
      %p329 = scmp.eq.s32.totalorder %s31, 0
      %p330 = por %p328, %p329
      %s331 = ssub.s32 %s33, %s40
      %p332 = scmp.eq.s32.totalorder %s331, 0
      %s334 = sadd.s32 %s333, 1
      %s335 = scalar_select %p332, %s333, %s334
      %p338 = pneg %p332
      %p339 = scmp.eq.s32.totalorder %s25, 3
      %p340 = por %p338, %p339
      %p341 = scmp.ne.s32.totalorder %s333, %s336
      %p342 = scmp.eq.s32.totalorder %s25, 0
      %p343 = por %p341, %p342
      %p344 = scmp.ne.s32.totalorder %s333, %s336
      %p345 = scmp.eq.s32.totalorder %s30, 3
      %p346 = por %p344, %p345
      %p347 = scmp.ne.s32.totalorder %s336, %s337
      %p348 = scmp.eq.s32.totalorder %s30, 0
      %p349 = por %p347, %p348
      %p350 = scmp.ne.s32.totalorder %s336, %s337
      %p351 = scmp.eq.s32.totalorder %s31, 3
      %p352 = por %p350, %p351
      %p354 = scmp.ne.s32.totalorder %s337, %s353
      %p355 = scmp.eq.s32.totalorder %s31, 0
      %p356 = por %p354, %p355
      %s357 = ssub.s32 %s33, %s40
      %p358 = scmp.eq.s32.totalorder %s357, 0
      %s360 = sadd.s32 %s359, 1
      %s361 = scalar_select %p358, %s359, %s360
      %p364 = pneg %p358
      %p365 = scmp.eq.s32.totalorder %s25, 3
      %p366 = por %p364, %p365
      %p367 = scmp.ne.s32.totalorder %s359, %s362
      %p368 = scmp.eq.s32.totalorder %s25, 0
      %p369 = por %p367, %p368
      %p370 = scmp.ne.s32.totalorder %s359, %s362
      %p371 = scmp.eq.s32.totalorder %s30, 3
      %p372 = por %p370, %p371
      %p373 = scmp.ne.s32.totalorder %s362, %s363
      %p374 = scmp.eq.s32.totalorder %s30, 0
      %p375 = por %p373, %p374
      %p376 = scmp.ne.s32.totalorder %s362, %s363
      %p377 = scmp.eq.s32.totalorder %s31, 3
      %p378 = por %p376, %p377
      %p380 = scmp.ne.s32.totalorder %s363, %s379
      %p381 = scmp.eq.s32.totalorder %s31, 0
      %p382 = por %p380, %p381
      %s383 = ssub.s32 %s33, %s40
      %p384 = scmp.eq.s32.totalorder %s383, 0
      %s386 = sadd.s32 %s385, 1
      %s387 = scalar_select %p384, %s385, %s386
      %p390 = pneg %p384
      %p391 = scmp.eq.s32.totalorder %s25, 3
      %p392 = por %p390, %p391
      %p393 = scmp.ne.s32.totalorder %s385, %s388
      %p394 = scmp.eq.s32.totalorder %s25, 0
      %p395 = por %p393, %p394
      %p396 = scmp.ne.s32.totalorder %s385, %s388
      %p397 = scmp.eq.s32.totalorder %s30, 3
      %p398 = por %p396, %p397
      %p399 = scmp.ne.s32.totalorder %s388, %s389
      %p400 = scmp.eq.s32.totalorder %s30, 0
      %p401 = por %p399, %p400
      %p402 = scmp.ne.s32.totalorder %s388, %s389
      %p403 = scmp.eq.s32.totalorder %s31, 3
      %p404 = por %p402, %p403
      %p406 = scmp.ne.s32.totalorder %s389, %s405
      %p407 = scmp.eq.s32.totalorder %s31, 0
      %p408 = por %p406, %p407
      %s409 = ssub.s32 %s33, %s40
      %p410 = scmp.eq.s32.totalorder %s409, 0
      %s412 = sadd.s32 %s411, 1
      %s413 = scalar_select %p410, %s411, %s412
      %p416 = pneg %p410
      %p417 = scmp.eq.s32.totalorder %s25, 3
      %p418 = por %p416, %p417
      %p419 = scmp.ne.s32.totalorder %s411, %s414
      %p420 = scmp.eq.s32.totalorder %s25, 0
      %p421 = por %p419, %p420
      %p422 = scmp.ne.s32.totalorder %s411, %s414
      %p423 = scmp.eq.s32.totalorder %s30, 3
      %p424 = por %p422, %p423
      %p425 = scmp.ne.s32.totalorder %s414, %s415
      %p426 = scmp.eq.s32.totalorder %s30, 0
      %p427 = por %p425, %p426
      %p428 = scmp.ne.s32.totalorder %s414, %s415
      %p429 = scmp.eq.s32.totalorder %s31, 3
      %p430 = por %p428, %p429
      %p432 = scmp.ne.s32.totalorder %s415, %s431
      %p433 = scmp.eq.s32.totalorder %s31, 0
      %p434 = por %p432, %p433
      %s435 = ssub.s32 %s33, %s40
      %p436 = scmp.eq.s32.totalorder %s435, 0
      %s438 = sadd.s32 %s437, 1
      %s439 = scalar_select %p436, %s437, %s438
      %p442 = pneg %p436
      %p443 = scmp.eq.s32.totalorder %s25, 3
      %p444 = por %p442, %p443
      %p445 = scmp.ne.s32.totalorder %s437, %s440
      %p446 = scmp.eq.s32.totalorder %s25, 0
      %p447 = por %p445, %p446
      %p448 = scmp.ne.s32.totalorder %s437, %s440
      %p449 = scmp.eq.s32.totalorder %s30, 3
      %p450 = por %p448, %p449
      %p451 = scmp.ne.s32.totalorder %s440, %s441
      %p452 = scmp.eq.s32.totalorder %s30, 0
      %p453 = por %p451, %p452
      %p454 = scmp.ne.s32.totalorder %s440, %s441
      %p455 = scmp.eq.s32.totalorder %s31, 3
      %p456 = por %p454, %p455
      %p458 = scmp.ne.s32.totalorder %s441, %s457
      %p459 = scmp.eq.s32.totalorder %s31, 0
      %p460 = por %p458, %p459
      %s461 = ssub.s32 %s32, %s44
      %p462 = scmp.eq.s32.totalorder %s461, 0
      %s464 = sadd.s32 %s463, 1
      %s465 = scalar_select %p462, %s463, %s464
      %p468 = pneg %p462
      %p469 = scmp.eq.s32.totalorder %s25, 3
      %p470 = por %p468, %p469
      %p471 = scmp.ne.s32.totalorder %s463, %s466
      %p472 = scmp.eq.s32.totalorder %s25, 0
      %p473 = por %p471, %p472
      %p474 = scmp.ne.s32.totalorder %s463, %s466
      %p475 = scmp.eq.s32.totalorder %s30, 3
      %p476 = por %p474, %p475
      %p477 = scmp.ne.s32.totalorder %s466, %s467
      %p478 = scmp.eq.s32.totalorder %s30, 0
      %p479 = por %p477, %p478
      %p480 = scmp.ne.s32.totalorder %s466, %s467
      %p481 = scmp.eq.s32.totalorder %s31, 3
      %p482 = por %p480, %p481
      %p484 = scmp.ne.s32.totalorder %s467, %s483
      %p485 = scmp.eq.s32.totalorder %s31, 0
      %p486 = por %p484, %p485
      %p487 = scmp.le.s32.totalorder 1, %s25
      %p488 = scmp.lt.s32.totalorder %s25, 5
      %p489 = pnand %p487, %p488
      %p490 = pneg %p489
      // Predicated region
      $region9: #{tpu_custom_call.1} parent=5 // pred_check
        _
      $region10: #{tpu_custom_call.1} parent=5 // pred_check_branch
        %492 = sbr.rel (%p489) target = $region12
      $region11: #{tpu_custom_call.1} parent=5 // pred_region
        %s493 = ssub.s32 %s25, 1
      $region12: #{tpu_custom_call.1} parent=5 // pred_fallthru
        _
      %p494 = scmp.lt.s32.totalorder %s25, 4
      // Predicated region
      $region13: #{tpu_custom_call.1} parent=5 // pred_check
        %p495 = pneg %p494
      $region14: #{tpu_custom_call.1} parent=5 // pred_check_branch
        %497 = sbr.rel (%p495) target = $region16
      $region15: #{tpu_custom_call.1} parent=5 // pred_region
        // Predicated region
        $region17: #{tpu_custom_call.1} parent=15 // pred_check
          %p498 = pneg %p57
        $region18: #{tpu_custom_call.1} parent=15 // pred_check_branch
          %500 = sbr.rel (%p498) target = $region20
        $region19: #{tpu_custom_call.1} parent=15 // pred_region
          %p501 = scmp.lt.s32.totalorder %s32, 1
          %s502 = scalar_select %p501, %s32, 1
          %s503 = smul.addr %s502, 8
          %s504 = scalar_lea.vmem %s0, %s503
        $region20: #{tpu_custom_call.1} parent=15 // pred_fallthru
          _
        // Predicated region
        $region21: #{tpu_custom_call.1} parent=15 // pred_check
          %p505 = pneg %p83
        $region22: #{tpu_custom_call.1} parent=15 // pred_check_branch
          %507 = sbr.rel (%p505) target = $region24
        $region23: #{tpu_custom_call.1} parent=15 // pred_region
          %p508 = scmp.lt.s32.totalorder %s32, 1
          %s509 = scalar_select %p508, %s32, 1
          %s510 = smul.addr %s509, 8
          %s511 = scalar_lea.vmem %s1, %s510
        $region24: #{tpu_custom_call.1} parent=15 // pred_fallthru
          _
        // Predicated region
        $region25: #{tpu_custom_call.1} parent=15 // pred_check
          %p512 = pneg %p109
        $region26: #{tpu_custom_call.1} parent=15 // pred_check_branch
          %514 = sbr.rel (%p512) target = $region28
        $region27: #{tpu_custom_call.1} parent=15 // pred_region
          %p515 = scmp.lt.s32.totalorder %s33, 1
          %s516 = scalar_select %p515, %s33, 1
          %s517 = smul.addr %s516, 8
          %s518 = smul.addr %s517, 4
          %s519 = scalar_lea.vmem %s2, %s518
        $region28: #{tpu_custom_call.1} parent=15 // pred_fallthru
          _
        // Predicated region
        $region29: #{tpu_custom_call.1} parent=15 // pred_check
          %p520 = pneg %p135
        $region30: #{tpu_custom_call.1} parent=15 // pred_check_branch
          %522 = sbr.rel (%p520) target = $region32
        $region31: #{tpu_custom_call.1} parent=15 // pred_region
          %p523 = scmp.lt.s32.totalorder %s33, 1
          %s524 = scalar_select %p523, %s33, 1
          %s525 = scalar_lea.vmem %s3, %s524
        $region32: #{tpu_custom_call.1} parent=15 // pred_fallthru
          _
        // Predicated region
        $region33: #{tpu_custom_call.1} parent=15 // pred_check
          %p526 = pneg %p161
        $region34: #{tpu_custom_call.1} parent=15 // pred_check_branch
          %528 = sbr.rel (%p526) target = $region36
        $region35: #{tpu_custom_call.1} parent=15 // pred_region
          %p529 = scmp.lt.s32.totalorder %s33, 1
          %s530 = scalar_select %p529, %s33, 1
          %s531 = smul.addr %s530, 4
          %s532 = smul.addr %s531, 4
          %s533 = scalar_lea.vmem %s4, %s532
        $region36: #{tpu_custom_call.1} parent=15 // pred_fallthru
          _
        // Predicated region
        $region37: #{tpu_custom_call.1} parent=15 // pred_check
          %p534 = pneg %p187
        $region38: #{tpu_custom_call.1} parent=15 // pred_check_branch
          %536 = sbr.rel (%p534) target = $region40
        $region39: #{tpu_custom_call.1} parent=15 // pred_region
          %p537 = scmp.lt.s32.totalorder %s33, 1
          %s538 = scalar_select %p537, %s33, 1
          %s539 = scalar_lea.vmem %s5, %s538
        $region40: #{tpu_custom_call.1} parent=15 // pred_fallthru
          _
        // Predicated region
        $region41: #{tpu_custom_call.1} parent=15 // pred_check
          %p540 = pneg %p213
        $region42: #{tpu_custom_call.1} parent=15 // pred_check_branch
          %542 = sbr.rel (%p540) target = $region44
        $region43: #{tpu_custom_call.1} parent=15 // pred_region
          %p543 = scmp.lt.s32.totalorder %s33, 1
          %s544 = scalar_select %p543, %s33, 1
          %s545 = smul.addr %s544, 4
          %s546 = smul.addr %s545, 4
          %s547 = scalar_lea.vmem %s6, %s546
        $region44: #{tpu_custom_call.1} parent=15 // pred_fallthru
          _
        // Predicated region
        $region45: #{tpu_custom_call.1} parent=15 // pred_check
          %p548 = pneg %p239
        $region46: #{tpu_custom_call.1} parent=15 // pred_check_branch
          %550 = sbr.rel (%p548) target = $region48
        $region47: #{tpu_custom_call.1} parent=15 // pred_region
          %p551 = scmp.lt.s32.totalorder %s33, 1
          %s552 = scalar_select %p551, %s33, 1
          %s553 = scalar_lea.vmem %s7, %s552
        $region48: #{tpu_custom_call.1} parent=15 // pred_fallthru
          _
        // Predicated region
        $region49: #{tpu_custom_call.1} parent=15 // pred_check
          %p554 = pneg %p265
        $region50: #{tpu_custom_call.1} parent=15 // pred_check_branch
          %556 = sbr.rel (%p554) target = $region52
        $region51: #{tpu_custom_call.1} parent=15 // pred_region
          %p557 = scmp.lt.s32.totalorder %s33, 1
          %s558 = scalar_select %p557, %s33, 1
          %s559 = scalar_lea.vmem %s8, %s558
        $region52: #{tpu_custom_call.1} parent=15 // pred_fallthru
          _
        // Predicated region
        $region53: #{tpu_custom_call.1} parent=15 // pred_check
          %p560 = pneg %p291
        $region54: #{tpu_custom_call.1} parent=15 // pred_check_branch
          %562 = sbr.rel (%p560) target = $region56
        $region55: #{tpu_custom_call.1} parent=15 // pred_region
          %p563 = scmp.lt.s32.totalorder %s33, 1
          %s564 = scalar_select %p563, %s33, 1
          %s565 = scalar_lea.vmem %s9, %s564
        $region56: #{tpu_custom_call.1} parent=15 // pred_fallthru
          _
        // Predicated region
        $region57: #{tpu_custom_call.1} parent=15 // pred_check
          %p566 = pneg %p317
        $region58: #{tpu_custom_call.1} parent=15 // pred_check_branch
          %568 = sbr.rel (%p566) target = $region60
        $region59: #{tpu_custom_call.1} parent=15 // pred_region
          %p569 = scmp.lt.s32.totalorder %s33, 1
          %s570 = scalar_select %p569, %s33, 1
          %s571 = smul.addr %s570, 8
          %s572 = smul.addr %s571, 4
          %s573 = scalar_lea.vmem %s10, %s572
        $region60: #{tpu_custom_call.1} parent=15 // pred_fallthru
          _
        // Predicated region
        $region61: #{tpu_custom_call.1} parent=15 // pred_check
          %p574 = pneg %p343
        $region62: #{tpu_custom_call.1} parent=15 // pred_check_branch
          %576 = sbr.rel (%p574) target = $region64
        $region63: #{tpu_custom_call.1} parent=15 // pred_region
          %p577 = scmp.lt.s32.totalorder %s33, 1
          %s578 = scalar_select %p577, %s33, 1
          %s579 = scalar_lea.vmem %s11, %s578
        $region64: #{tpu_custom_call.1} parent=15 // pred_fallthru
          _
        // Predicated region
        $region65: #{tpu_custom_call.1} parent=15 // pred_check
          %p580 = pneg %p369
        $region66: #{tpu_custom_call.1} parent=15 // pred_check_branch
          %582 = sbr.rel (%p580) target = $region68
        $region67: #{tpu_custom_call.1} parent=15 // pred_region
          %p583 = scmp.lt.s32.totalorder %s33, 1
          %s584 = scalar_select %p583, %s33, 1
          %s585 = smul.addr %s584, 4
          %s586 = smul.addr %s585, 4
          %s587 = scalar_lea.vmem %s12, %s586
        $region68: #{tpu_custom_call.1} parent=15 // pred_fallthru
          _
        // Predicated region
        $region69: #{tpu_custom_call.1} parent=15 // pred_check
          %p588 = pneg %p395
        $region70: #{tpu_custom_call.1} parent=15 // pred_check_branch
          %590 = sbr.rel (%p588) target = $region72
        $region71: #{tpu_custom_call.1} parent=15 // pred_region
          %p591 = scmp.lt.s32.totalorder %s33, 1
          %s592 = scalar_select %p591, %s33, 1
          %s593 = scalar_lea.vmem %s13, %s592
        $region72: #{tpu_custom_call.1} parent=15 // pred_fallthru
          _
        // Predicated region
        $region73: #{tpu_custom_call.1} parent=15 // pred_check
          %p594 = pneg %p421
        $region74: #{tpu_custom_call.1} parent=15 // pred_check_branch
          %596 = sbr.rel (%p594) target = $region76
        $region75: #{tpu_custom_call.1} parent=15 // pred_region
          %p597 = scmp.lt.s32.totalorder %s33, 1
          %s598 = scalar_select %p597, %s33, 1
          %s599 = scalar_lea.vmem %s14, %s598
        $region76: #{tpu_custom_call.1} parent=15 // pred_fallthru
          _
        // Predicated region
        $region77: #{tpu_custom_call.1} parent=15 // pred_check
          %p600 = pneg %p447
        $region78: #{tpu_custom_call.1} parent=15 // pred_check_branch
          %602 = sbr.rel (%p600) target = $region80
        $region79: #{tpu_custom_call.1} parent=15 // pred_region
          %p603 = scmp.lt.s32.totalorder %s33, 1
          %s604 = scalar_select %p603, %s33, 1
          %s605 = scalar_lea.vmem %s15, %s604
        $region80: #{tpu_custom_call.1} parent=15 // pred_fallthru
          _
      $region16: #{tpu_custom_call.1} parent=5 // pred_fallthru
        _
      %p606 = scmp.le.s32.totalorder 1, %s25
      %p607 = scmp.lt.s32.totalorder %s25, 5
      %p608 = pnand %p606, %p607
      %p609 = pneg %p608
      // Predicated region
      $region81: #{tpu_custom_call.1} parent=5 // pred_check
        _
      $region82: #{tpu_custom_call.1} parent=5 // pred_check_branch
        %611 = sbr.rel (%p608) target = $region84
      $region83: #{tpu_custom_call.1} parent=5 // pred_region
        %s612 = ssub.s32 %s25, 1
        %p613 = scmp.lt.s32.totalorder %s34, 1
        %s614 = scalar_select %p613, %s34, 1
        %s615 = smul.addr %s614, 8
        %s616 = scalar_lea.vmem %s0, %s615
        %p617 = pneg %p63
        %p618 = pneg %p60
        %p619 = scmp.lt.s32.totalorder %s34, 1
        %s620 = scalar_select %p619, %s34, 1
        %s621 = smul.addr %s620, 8
        %s622 = scalar_lea.vmem %s1, %s621
        %p623 = pneg %p89
        %p624 = pneg %p86
        %p625 = scmp.lt.s32.totalorder %s35, 1
        %s626 = scalar_select %p625, %s35, 1
        %s627 = smul.addr %s626, 8
        %s628 = smul.addr %s627, 4
        %s629 = scalar_lea.vmem %s2, %s628
        %p630 = pneg %p115
        %p631 = pneg %p112
        %p632 = scmp.lt.s32.totalorder %s35, 1
        %s633 = scalar_select %p632, %s35, 1
        %s634 = scalar_lea.vmem %s3, %s633
        %p635 = pneg %p141
        %p636 = pneg %p138
        %p637 = scmp.lt.s32.totalorder %s35, 1
        %s638 = scalar_select %p637, %s35, 1
        %s639 = smul.addr %s638, 4
        %s640 = smul.addr %s639, 4
        %s641 = scalar_lea.vmem %s4, %s640
        %p642 = pneg %p167
        %p643 = pneg %p164
        %p644 = scmp.lt.s32.totalorder %s35, 1
        %s645 = scalar_select %p644, %s35, 1
        %s646 = scalar_lea.vmem %s5, %s645
        %p647 = pneg %p193
        %p648 = pneg %p190
        %p649 = scmp.lt.s32.totalorder %s35, 1
        %s650 = scalar_select %p649, %s35, 1
        %s651 = smul.addr %s650, 4
        %s652 = smul.addr %s651, 4
        %s653 = scalar_lea.vmem %s6, %s652
        %p654 = pneg %p219
        %p655 = pneg %p216
        %p656 = scmp.lt.s32.totalorder %s35, 1
        %s657 = scalar_select %p656, %s35, 1
        %s658 = scalar_lea.vmem %s7, %s657
        %p659 = pneg %p245
        %p660 = pneg %p242
        %p661 = scmp.lt.s32.totalorder %s35, 1
        %s662 = scalar_select %p661, %s35, 1
        %s663 = scalar_lea.vmem %s8, %s662
        %p664 = pneg %p271
        %p665 = pneg %p268
        %p666 = scmp.lt.s32.totalorder %s35, 1
        %s667 = scalar_select %p666, %s35, 1
        %s668 = scalar_lea.vmem %s9, %s667
        %p669 = pneg %p297
        %p670 = pneg %p294
        %p671 = scmp.lt.s32.totalorder %s35, 1
        %s672 = scalar_select %p671, %s35, 1
        %s673 = smul.addr %s672, 8
        %s674 = smul.addr %s673, 4
        %s675 = scalar_lea.vmem %s10, %s674
        %p676 = pneg %p323
        %p677 = pneg %p320
        %p678 = scmp.lt.s32.totalorder %s35, 1
        %s679 = scalar_select %p678, %s35, 1
        %s680 = scalar_lea.vmem %s11, %s679
        %p681 = pneg %p349
        %p682 = pneg %p346
        %p683 = scmp.lt.s32.totalorder %s35, 1
        %s684 = scalar_select %p683, %s35, 1
        %s685 = smul.addr %s684, 4
        %s686 = smul.addr %s685, 4
        %s687 = scalar_lea.vmem %s12, %s686
        %p688 = pneg %p375
        %p689 = pneg %p372
        %p690 = scmp.lt.s32.totalorder %s35, 1
        %s691 = scalar_select %p690, %s35, 1
        %s692 = scalar_lea.vmem %s13, %s691
        %p693 = pneg %p401
        %p694 = pneg %p398
        %p695 = scmp.lt.s32.totalorder %s35, 1
        %s696 = scalar_select %p695, %s35, 1
        %s697 = scalar_lea.vmem %s14, %s696
        %p698 = pneg %p427
        %p699 = pneg %p424
        %p700 = scmp.lt.s32.totalorder %s35, 1
        %s701 = scalar_select %p700, %s35, 1
        %s702 = scalar_lea.vmem %s15, %s701
        %p703 = pneg %p453
        %p704 = pneg %p450
        %p705 = pneg %p479
        %p706 = pneg %p476
        %s707 = sand.u32 %s466, 1
        %s708 = scalar_lea.sflag [#allocation3], %s707
        %s709 = sand.u32 %s466, 1
        %s710 = smul.addr %s709, 8
        %s711 = scalar_lea.vmem [#allocation2], %s710
        %p712 = scmp.lt.s32.totalorder %s34, 1
        %s713 = scalar_select %p712, %s34, 1
        %s714 = smul.addr %s713, 8
        %s715 = scalar_lea.vmem %s0, %s714
        %p716 = scmp.lt.s32.totalorder %s34, 1
        %s717 = scalar_select %p716, %s34, 1
        %s718 = smul.addr %s717, 8
        %s719 = scalar_lea.vmem %s1, %s718
        %p720 = scmp.lt.s32.totalorder %s35, 1
        %s721 = scalar_select %p720, %s35, 1
        %s722 = smul.addr %s721, 8
        %s723 = smul.addr %s722, 4
        %s724 = scalar_lea.vmem %s2, %s723
        %p725 = scmp.lt.s32.totalorder %s35, 1
        %s726 = scalar_select %p725, %s35, 1
        %s727 = scalar_lea.vmem %s3, %s726
        %p728 = scmp.lt.s32.totalorder %s35, 1
        %s729 = scalar_select %p728, %s35, 1
        %s730 = smul.addr %s729, 4
        %s731 = smul.addr %s730, 4
        %s732 = scalar_lea.vmem %s4, %s731
        %p733 = scmp.lt.s32.totalorder %s35, 1
        %s734 = scalar_select %p733, %s35, 1
        %s735 = scalar_lea.vmem %s5, %s734
        %p736 = scmp.lt.s32.totalorder %s35, 1
        %s737 = scalar_select %p736, %s35, 1
        %s738 = smul.addr %s737, 4
        %s739 = smul.addr %s738, 4
        %s740 = scalar_lea.vmem %s6, %s739
        %p741 = scmp.lt.s32.totalorder %s35, 1
        %s742 = scalar_select %p741, %s35, 1
        %s743 = scalar_lea.vmem %s7, %s742
        %p744 = scmp.lt.s32.totalorder %s35, 1
        %s745 = scalar_select %p744, %s35, 1
        %s746 = scalar_lea.vmem %s8, %s745
        %p747 = scmp.lt.s32.totalorder %s35, 1
        %s748 = scalar_select %p747, %s35, 1
        %s749 = scalar_lea.vmem %s9, %s748
        %p750 = scmp.lt.s32.totalorder %s35, 1
        %s751 = scalar_select %p750, %s35, 1
        %s752 = smul.addr %s751, 8
        %s753 = smul.addr %s752, 4
        %s754 = scalar_lea.vmem %s10, %s753
        %p755 = scmp.lt.s32.totalorder %s35, 1
        %s756 = scalar_select %p755, %s35, 1
        %s757 = scalar_lea.vmem %s11, %s756
        %p758 = scmp.lt.s32.totalorder %s35, 1
        %s759 = scalar_select %p758, %s35, 1
        %s760 = smul.addr %s759, 4
        %s761 = smul.addr %s760, 4
        %s762 = scalar_lea.vmem %s12, %s761
        %p763 = scmp.lt.s32.totalorder %s35, 1
        %s764 = scalar_select %p763, %s35, 1
        %s765 = scalar_lea.vmem %s13, %s764
        %p766 = scmp.lt.s32.totalorder %s35, 1
        %s767 = scalar_select %p766, %s35, 1
        %s768 = scalar_lea.vmem %s14, %s767
        %p769 = scmp.lt.s32.totalorder %s35, 1
        %s770 = scalar_select %p769, %s35, 1
        %s771 = scalar_lea.vmem %s15, %s770
        %p773 = scmp.eq.s32.totalorder %s35, 0
        // Predicated region
        $region85: #{tpu_custom_call.1} parent=83 // pred_check
          %p774 = pneg %p773
        $region86: #{tpu_custom_call.1} parent=83 // pred_check_branch
          %776 = sbr.rel (%p774) target = $region88
        $region87: #{tpu_custom_call.1} parent=83 // pred_region
          %v777 = vld [vmem:[%s715] sm:$0xff]
          %vm778 = vcmask 261120
          %779 = vst.msk [vmem:[%s711] sm:$0xff] %vm778, %v777
        $region88: #{tpu_custom_call.1} parent=83 // pred_fallthru
          _
        %v780 = vld [vmem:[%s711] sm:$0xff]
        %v781 = vld [vmem:[%s719] sm:$0xff]
        %v782 = vadd.f32 %v780, %v781
        %v783 = vld [vmem:[%s724] sm:$0xf]
        %v784 = vld [vmem:[%s724 + $0x4] sm:$0xf]
        %v785 = vld [vmem:[%s724 + $0x8] sm:$0xf]
        %v786 = vld [vmem:[%s724 + $0xc] sm:$0xf]
        %v787 = vld [vmem:[%s724 + $0x10] sm:$0xf]
        %v788 = vld [vmem:[%s724 + $0x14] sm:$0xf]
        %v789 = vld [vmem:[%s724 + $0x18] sm:$0xf]
        %v790 = vld [vmem:[%s724 + $0x1c] sm:$0xf]
        %v791 = vpack.c.bf16 %v782, %v782
        %v792 = vld [vmem:[%s727] sm:$0x1]
        %v794 = vlaneseq
        %v795 = vshrl.u32 %v794, 7
        %v796 = vsub.s32 0, %v795
        %v797 = vrot.slane %v792, %v796
        %v807 = vunpack.c.l.b16 %v783
        %v808 = vunpack.c.l.b16 %v784
        %v809 = vunpack.c.l.b16 %v785
        %v810 = vunpack.c.l.b16 %v786
        %v811 = vunpack.c.l.b16 %v787
        %v812 = vunpack.c.l.b16 %v788
        %v813 = vunpack.c.l.b16 %v789
        %v814 = vunpack.c.l.b16 %v790
        %v815 = vpack.c.b16 %v808, %v807
        %v816 = vpack.c.b16 %v810, %v809
        %v817 = vpack.c.b16 %v812, %v811
        %v818 = vpack.c.b16 %v814, %v813
        %vm819 = vcmask 261120
        %v821 = vsel %vm819, %v791, 0
        %v824 = vsel %vm819, %v815, 0
        %v827 = vsel %vm819, %v816, 0
        %v830 = vsel %vm819, %v817, 0
        %v833 = vsel %vm819, %v818, 0
        %835 = vmatprep.subr.bf16.mxu0 0
        %836 = vmatpush1.bf16.xpose.msra.mxu0 %v824
        %837 = vmatprep.subr.bf16.mxu0 0
        %838 = vmatpush1.bf16.xpose.msra.mxu0 %v827
        %839 = vmatprep.subr.bf16.mxu0 0
        %840 = vmatpush1.bf16.xpose.msra.mxu0 %v830
        %841 = vmatprep.subr.bf16.mxu0 0
        %842 = vmatpush1.bf16.xpose.msra.mxu0 %v833
        %843 = vmatprep.subr.bf16.mxu0 0
        %844 = vmatpush1.bf16.xpose.msra.mxu0 0
        %845 = vmatprep.subr.bf16.mxu0 0
        %846 = vmatpush1.bf16.xpose.msra.mxu0 0
        %847 = vmatprep.subr.bf16.mxu0 0
        %848 = vmatpush1.bf16.xpose.msra.mxu0 0
        %849 = vmatprep.subr.bf16.mxu0 0
        %850 = vmatpush1.bf16.xpose.msra.mxu0 0
        %851 = vmatprep.subr.bf16.mxu0 0
        %852 = vmatpush1.bf16.xpose.msra.mxu0 0
        %853 = vmatprep.subr.bf16.mxu0 0
        %854 = vmatpush1.bf16.xpose.msra.mxu0 0
        %855 = vmatprep.subr.bf16.mxu0 0
        %856 = vmatpush1.bf16.xpose.msra.mxu0 0
        %857 = vmatprep.subr.bf16.mxu0 0
        %858 = vmatpush1.bf16.xpose.msra.mxu0 0
        %859 = vmatprep.subr.bf16.mxu0 0
        %860 = vmatpush1.bf16.xpose.msra.mxu0 0
        %861 = vmatprep.subr.bf16.mxu0 0
        %862 = vmatpush1.bf16.xpose.msra.mxu0 0
        %863 = vmatprep.subr.bf16.mxu0 0
        %864 = vmatpush1.bf16.xpose.msra.mxu0 0
        %865 = vmatprep.subr.bf16.mxu0 0
        %866 = vmatpush1.bf16.xpose.msra.mxu0 0
        %867 = vmatprep.mubr.bf16.mxu0 0
        %868 = vmatmul.mubr.bf16.gmra.mrb[0].mxu0 %v821
        %v869 = vpop.f32.mrb[0].mxu0
        %v870 = vadd.f32 %v797, %v869
        %v871 = vpop.f32.mrb[0].mxu0
        %v872 = vpop.f32.mrb[0].mxu0
        %v873 = vpop.f32.mrb[0].mxu0
        %874 = vdwg.mxu0
        %v875 = vld [vmem:[%s732] sm:$0xf]
        %v876 = vld [vmem:[%s732 + $0x4] sm:$0xf]
        %v877 = vld [vmem:[%s732 + $0x8] sm:$0xf]
        %v878 = vld [vmem:[%s732 + $0xc] sm:$0xf]
        %v879 = vpack.c.bf16 %v780, %v780
        %v880 = vld [vmem:[%s735] sm:$0x1]
        %v882 = vlaneseq
        %v883 = vshrl.u32 %v882, 7
        %v884 = vsub.s32 0, %v883
        %v885 = vrot.slane %v880, %v884
        %v891 = vunpack.c.l.b16 %v875
        %v892 = vunpack.c.l.b16 %v876
        %v893 = vunpack.c.l.b16 %v877
        %v894 = vunpack.c.l.b16 %v878
        %v895 = vpack.c.b16 %v892, %v891
        %v896 = vpack.c.b16 %v894, %v893
        %v898 = vsel %vm819, %v879, 0
        %v901 = vsel %vm819, %v895, 0
        %v904 = vsel %vm819, %v896, 0
        %906 = vmatprep.subr.bf16.mxu0 0
        %907 = vmatpush1.bf16.xpose.msra.mxu0 %v901
        %908 = vmatprep.subr.bf16.mxu0 0
        %909 = vmatpush1.bf16.xpose.msra.mxu0 %v904
        %910 = vmatprep.subr.bf16.mxu0 0
        %911 = vmatpush1.bf16.xpose.msra.mxu0 0
        %912 = vmatprep.subr.bf16.mxu0 0
        %913 = vmatpush1.bf16.xpose.msra.mxu0 0
        %914 = vmatprep.subr.bf16.mxu0 0
        %915 = vmatpush1.bf16.xpose.msra.mxu0 0
        %916 = vmatprep.subr.bf16.mxu0 0
        %917 = vmatpush1.bf16.xpose.msra.mxu0 0
        %918 = vmatprep.subr.bf16.mxu0 0
        %919 = vmatpush1.bf16.xpose.msra.mxu0 0
        %920 = vmatprep.subr.bf16.mxu0 0
        %921 = vmatpush1.bf16.xpose.msra.mxu0 0
        %922 = vmatprep.subr.bf16.mxu0 0
        %923 = vmatpush1.bf16.xpose.msra.mxu0 0
        %924 = vmatprep.subr.bf16.mxu0 0
        %925 = vmatpush1.bf16.xpose.msra.mxu0 0
        %926 = vmatprep.subr.bf16.mxu0 0
        %927 = vmatpush1.bf16.xpose.msra.mxu0 0
        %928 = vmatprep.subr.bf16.mxu0 0
        %929 = vmatpush1.bf16.xpose.msra.mxu0 0
        %930 = vmatprep.subr.bf16.mxu0 0
        %931 = vmatpush1.bf16.xpose.msra.mxu0 0
        %932 = vmatprep.subr.bf16.mxu0 0
        %933 = vmatpush1.bf16.xpose.msra.mxu0 0
        %934 = vmatprep.subr.bf16.mxu0 0
        %935 = vmatpush1.bf16.xpose.msra.mxu0 0
        %936 = vmatprep.subr.bf16.mxu0 0
        %937 = vmatpush1.bf16.xpose.msra.mxu0 0
        %938 = vmatprep.mubr.bf16.mxu0 0
        %939 = vmatmul.mubr.bf16.gmra.mrb[0].mxu0 %v898
        %v940 = vpop.f32.mrb[0].mxu0
        %v941 = vadd.f32 %v885, %v940
        %v942 = vpop.f32.mrb[0].mxu0
        %v943 = vpop.f32.mrb[0].mxu0
        %v944 = vpop.f32.mrb[0].mxu0
        %945 = vdwg.mxu0
        %947 = vrot.lane.b32.xlu0 %v870, 120
        %v948 = vpop.permute.xlu0 %947
        %950 = vrot.lane.b32.xlu0 %v870, 112
        %v951 = vpop.permute.xlu0 %950
        %953 = vrot.lane.b32.xlu0 %v870, 104
        %v954 = vpop.permute.xlu0 %953
        %v956 = vcombine.low %v870, %v951
        %v957 = vcombine.high %v870, %v951
        %v959 = vunpack.c.l.s4 1983009808
        %v960 = vunpack.c.0.s8 %v959
        %v961 = vlaneseq
        %v962 = vshrl.u32 %v961, 7
        %v963 = vsub.s32 %v960, %v962
        %v964 = vrot.slane %v956, %v963
        %v966 = vunpack.c.l.s4 1983009808
        %v967 = vunpack.c.0.s8 %v966
        %v968 = vlaneseq
        %v969 = vshrl.u32 %v968, 7
        %v970 = vsub.s32 %v967, %v969
        %v971 = vrot.slane %v957, %v970
        %v972 = vcombine.low %v948, %v954
        %v973 = vcombine.high %v948, %v954
        %v975 = vunpack.c.l.s4 1983009808
        %v976 = vunpack.c.0.s8 %v975
        %v977 = vlaneseq
        %v978 = vshrl.u32 %v977, 7
        %v979 = vsub.s32 %v976, %v978
        %v980 = vrot.slane %v972, %v979
        %v982 = vunpack.c.l.s4 1983009808
        %v983 = vunpack.c.0.s8 %v982
        %v984 = vlaneseq
        %v985 = vshrl.u32 %v984, 7
        %v986 = vsub.s32 %v983, %v985
        %v987 = vrot.slane %v973, %v986
        %v988 = vcombine.low %v964, %v980
        %v989 = vcombine.high %v964, %v980
        %v991 = vunpack.c.l.s4 1934713408
        %v992 = vunpack.c.0.s8 %v991
        %v993 = vlaneseq
        %v994 = vshrl.u32 %v993, 7
        %v995 = vsub.s32 %v992, %v994
        %v996 = vrot.slane %v988, %v995
        %v998 = vunpack.c.l.s4 1934713408
        %v999 = vunpack.c.0.s8 %v998
        %v1000 = vlaneseq
        %v1001 = vshrl.u32 %v1000, 7
        %v1002 = vsub.s32 %v999, %v1001
        %v1003 = vrot.slane %v989, %v1002
        %v1004 = vcombine.low %v971, %v987
        %v1005 = vcombine.high %v971, %v987
        %v1007 = vunpack.c.l.s4 1934713408
        %v1008 = vunpack.c.0.s8 %v1007
        %v1009 = vlaneseq
        %v1010 = vshrl.u32 %v1009, 7
        %v1011 = vsub.s32 %v1008, %v1010
        %v1012 = vrot.slane %v1004, %v1011
        %v1014 = vunpack.c.l.s4 1934713408
        %v1015 = vunpack.c.0.s8 %v1014
        %v1016 = vlaneseq
        %v1017 = vshrl.u32 %v1016, 7
        %v1018 = vsub.s32 %v1015, %v1017
        %v1019 = vrot.slane %v1005, %v1018
        %v1020 = vcombine.high %v996, 0.0
        %v1021 = vcombine.high %v1003, 0.0
        %v1022 = vcombine.high %v1012, 0.0
        %v1023 = vcombine.high %v1019, 0.0
        %v1024 = vcombine.low %v996, %v1003
        %v1026 = vunpack.c.l.s4 1983009808
        %v1027 = vunpack.c.0.s8 %v1026
        %v1028 = vlaneseq
        %v1029 = vshrl.u32 %v1028, 7
        %v1030 = vsub.s32 %v1027, %v1029
        %v1031 = vrot.slane %v1024, %v1030
        %v1032 = vcombine.low %v1020, %v1021
        %v1034 = vunpack.c.l.s4 1983009808
        %v1035 = vunpack.c.0.s8 %v1034
        %v1036 = vlaneseq
        %v1037 = vshrl.u32 %v1036, 7
        %v1038 = vsub.s32 %v1035, %v1037
        %v1039 = vrot.slane %v1032, %v1038
        %v1040 = vcombine.low %v1012, %v1019
        %v1042 = vunpack.c.l.s4 1983009808
        %v1043 = vunpack.c.0.s8 %v1042
        %v1044 = vlaneseq
        %v1045 = vshrl.u32 %v1044, 7
        %v1046 = vsub.s32 %v1043, %v1045
        %v1047 = vrot.slane %v1040, %v1046
        %v1048 = vcombine.low %v1022, %v1023
        %v1050 = vunpack.c.l.s4 1983009808
        %v1051 = vunpack.c.0.s8 %v1050
        %v1052 = vlaneseq
        %v1053 = vshrl.u32 %v1052, 7
        %v1054 = vsub.s32 %v1051, %v1053
        %v1055 = vrot.slane %v1048, %v1054
        %v1056 = vcombine.low %v1031, %v1039
        %v1057 = vcombine.high %v1031, %v1039
        %v1059 = vunpack.c.l.s4 1934713408
        %v1060 = vunpack.c.0.s8 %v1059
        %v1061 = vlaneseq
        %v1062 = vshrl.u32 %v1061, 7
        %v1063 = vsub.s32 %v1060, %v1062
        %v1064 = vrot.slane %v1056, %v1063
        %v1066 = vunpack.c.l.s4 1934713408
        %v1067 = vunpack.c.0.s8 %v1066
        %v1068 = vlaneseq
        %v1069 = vshrl.u32 %v1068, 7
        %v1070 = vsub.s32 %v1067, %v1069
        %v1071 = vrot.slane %v1057, %v1070
        %v1072 = vcombine.low %v1047, %v1055
        %v1073 = vcombine.high %v1047, %v1055
        %v1075 = vunpack.c.l.s4 1934713408
        %v1076 = vunpack.c.0.s8 %v1075
        %v1077 = vlaneseq
        %v1078 = vshrl.u32 %v1077, 7
        %v1079 = vsub.s32 %v1076, %v1078
        %v1080 = vrot.slane %v1072, %v1079
        %v1082 = vunpack.c.l.s4 1934713408
        %v1083 = vunpack.c.0.s8 %v1082
        %v1084 = vlaneseq
        %v1085 = vshrl.u32 %v1084, 7
        %v1086 = vsub.s32 %v1083, %v1085
        %v1087 = vrot.slane %v1073, %v1086
        %v1088 = vcombine.low %v1064, %v1080
        %v1089 = vcombine.high %v1064, %v1080
        %v1090 = vcombine.low %v1071, %v1087
        %v1091 = vcombine.high %v1071, %v1087
        %v1092 = vpack.c.bf16 %v1088, %v1088
        %v1093 = vpack.c.bf16 %v1089, %v1089
        %v1094 = vpack.c.bf16 %v1090, %v1090
        %v1095 = vpack.c.bf16 %v1091, %v1091
        %1096 = vrot.lane.b32.xlu0 %v870, 96
        %v1097 = vpop.permute.xlu0 %1096
        %1098 = vrot.lane.b32.xlu0 %v948, 96
        %v1099 = vpop.permute.xlu0 %1098
        %1100 = vrot.lane.b32.xlu0 %v951, 96
        %v1101 = vpop.permute.xlu0 %1100
        %1102 = vrot.lane.b32.xlu0 %v954, 96
        %v1103 = vpop.permute.xlu0 %1102
        %v1108 = vcombine.low %v1097, %v1101
        %v1109 = vcombine.high %v1097, %v1101
        %v1111 = vunpack.c.l.s4 1983009808
        %v1112 = vunpack.c.0.s8 %v1111
        %v1113 = vlaneseq
        %v1114 = vshrl.u32 %v1113, 7
        %v1115 = vsub.s32 %v1112, %v1114
        %v1116 = vrot.slane %v1108, %v1115
        %v1118 = vunpack.c.l.s4 1983009808
        %v1119 = vunpack.c.0.s8 %v1118
        %v1120 = vlaneseq
        %v1121 = vshrl.u32 %v1120, 7
        %v1122 = vsub.s32 %v1119, %v1121
        %v1123 = vrot.slane %v1109, %v1122
        %v1124 = vcombine.low %v1099, %v1103
        %v1125 = vcombine.high %v1099, %v1103
        %v1127 = vunpack.c.l.s4 1983009808
        %v1128 = vunpack.c.0.s8 %v1127
        %v1129 = vlaneseq
        %v1130 = vshrl.u32 %v1129, 7
        %v1131 = vsub.s32 %v1128, %v1130
        %v1132 = vrot.slane %v1124, %v1131
        %v1134 = vunpack.c.l.s4 1983009808
        %v1135 = vunpack.c.0.s8 %v1134
        %v1136 = vlaneseq
        %v1137 = vshrl.u32 %v1136, 7
        %v1138 = vsub.s32 %v1135, %v1137
        %v1139 = vrot.slane %v1125, %v1138
        %v1140 = vcombine.low %v1116, %v1132
        %v1141 = vcombine.high %v1116, %v1132
        %v1143 = vunpack.c.l.s4 1934713408
        %v1144 = vunpack.c.0.s8 %v1143
        %v1145 = vlaneseq
        %v1146 = vshrl.u32 %v1145, 7
        %v1147 = vsub.s32 %v1144, %v1146
        %v1148 = vrot.slane %v1140, %v1147
        %v1150 = vunpack.c.l.s4 1934713408
        %v1151 = vunpack.c.0.s8 %v1150
        %v1152 = vlaneseq
        %v1153 = vshrl.u32 %v1152, 7
        %v1154 = vsub.s32 %v1151, %v1153
        %v1155 = vrot.slane %v1141, %v1154
        %v1156 = vcombine.low %v1123, %v1139
        %v1157 = vcombine.high %v1123, %v1139
        %v1159 = vunpack.c.l.s4 1934713408
        %v1160 = vunpack.c.0.s8 %v1159
        %v1161 = vlaneseq
        %v1162 = vshrl.u32 %v1161, 7
        %v1163 = vsub.s32 %v1160, %v1162
        %v1164 = vrot.slane %v1156, %v1163
        %v1166 = vunpack.c.l.s4 1934713408
        %v1167 = vunpack.c.0.s8 %v1166
        %v1168 = vlaneseq
        %v1169 = vshrl.u32 %v1168, 7
        %v1170 = vsub.s32 %v1167, %v1169
        %v1171 = vrot.slane %v1157, %v1170
        %v1172 = vcombine.high %v1148, 0.0
        %v1173 = vcombine.high %v1155, 0.0
        %v1174 = vcombine.high %v1164, 0.0
        %v1175 = vcombine.high %v1171, 0.0
        %v1176 = vcombine.low %v1148, %v1155
        %v1178 = vunpack.c.l.s4 1983009808
        %v1179 = vunpack.c.0.s8 %v1178
        %v1180 = vlaneseq
        %v1181 = vshrl.u32 %v1180, 7
        %v1182 = vsub.s32 %v1179, %v1181
        %v1183 = vrot.slane %v1176, %v1182
        %v1184 = vcombine.low %v1172, %v1173
        %v1186 = vunpack.c.l.s4 1983009808
        %v1187 = vunpack.c.0.s8 %v1186
        %v1188 = vlaneseq
        %v1189 = vshrl.u32 %v1188, 7
        %v1190 = vsub.s32 %v1187, %v1189
        %v1191 = vrot.slane %v1184, %v1190
        %v1192 = vcombine.low %v1164, %v1171
        %v1194 = vunpack.c.l.s4 1983009808
        %v1195 = vunpack.c.0.s8 %v1194
        %v1196 = vlaneseq
        %v1197 = vshrl.u32 %v1196, 7
        %v1198 = vsub.s32 %v1195, %v1197
        %v1199 = vrot.slane %v1192, %v1198
        %v1200 = vcombine.low %v1174, %v1175
        %v1202 = vunpack.c.l.s4 1983009808
        %v1203 = vunpack.c.0.s8 %v1202
        %v1204 = vlaneseq
        %v1205 = vshrl.u32 %v1204, 7
        %v1206 = vsub.s32 %v1203, %v1205
        %v1207 = vrot.slane %v1200, %v1206
        %v1208 = vcombine.low %v1183, %v1191
        %v1209 = vcombine.high %v1183, %v1191
        %v1211 = vunpack.c.l.s4 1934713408
        %v1212 = vunpack.c.0.s8 %v1211
        %v1213 = vlaneseq
        %v1214 = vshrl.u32 %v1213, 7
        %v1215 = vsub.s32 %v1212, %v1214
        %v1216 = vrot.slane %v1208, %v1215
        %v1218 = vunpack.c.l.s4 1934713408
        %v1219 = vunpack.c.0.s8 %v1218
        %v1220 = vlaneseq
        %v1221 = vshrl.u32 %v1220, 7
        %v1222 = vsub.s32 %v1219, %v1221
        %v1223 = vrot.slane %v1209, %v1222
        %v1224 = vcombine.low %v1199, %v1207
        %v1225 = vcombine.high %v1199, %v1207
        %v1227 = vunpack.c.l.s4 1934713408
        %v1228 = vunpack.c.0.s8 %v1227
        %v1229 = vlaneseq
        %v1230 = vshrl.u32 %v1229, 7
        %v1231 = vsub.s32 %v1228, %v1230
        %v1232 = vrot.slane %v1224, %v1231
        %v1234 = vunpack.c.l.s4 1934713408
        %v1235 = vunpack.c.0.s8 %v1234
        %v1236 = vlaneseq
        %v1237 = vshrl.u32 %v1236, 7
        %v1238 = vsub.s32 %v1235, %v1237
        %v1239 = vrot.slane %v1225, %v1238
        %v1240 = vcombine.low %v1216, %v1232
        %v1241 = vcombine.high %v1216, %v1232
        %v1242 = vcombine.low %v1223, %v1239
        %v1243 = vcombine.high %v1223, %v1239
        %v1244 = vpack.c.bf16 %v1240, %v1240
        %v1245 = vpack.c.bf16 %v1241, %v1241
        %v1246 = vpack.c.bf16 %v1242, %v1242
        %v1247 = vpack.c.bf16 %v1243, %v1243
        %1249 = vrot.lane.b32.xlu0 %v941, 120
        %v1250 = vpop.permute.xlu0 %1249
        %1252 = vrot.lane.b32.xlu0 %v941, 112
        %v1253 = vpop.permute.xlu0 %1252
        %1255 = vrot.lane.b32.xlu0 %v941, 104
        %v1256 = vpop.permute.xlu0 %1255
        %v1258 = vcombine.low %v941, %v1253
        %v1259 = vcombine.high %v941, %v1253
        %v1261 = vunpack.c.l.s4 1983009808
        %v1262 = vunpack.c.0.s8 %v1261
        %v1263 = vlaneseq
        %v1264 = vshrl.u32 %v1263, 7
        %v1265 = vsub.s32 %v1262, %v1264
        %v1266 = vrot.slane %v1258, %v1265
        %v1268 = vunpack.c.l.s4 1983009808
        %v1269 = vunpack.c.0.s8 %v1268
        %v1270 = vlaneseq
        %v1271 = vshrl.u32 %v1270, 7
        %v1272 = vsub.s32 %v1269, %v1271
        %v1273 = vrot.slane %v1259, %v1272
        %v1274 = vcombine.low %v1250, %v1256
        %v1275 = vcombine.high %v1250, %v1256
        %v1277 = vunpack.c.l.s4 1983009808
        %v1278 = vunpack.c.0.s8 %v1277
        %v1279 = vlaneseq
        %v1280 = vshrl.u32 %v1279, 7
        %v1281 = vsub.s32 %v1278, %v1280
        %v1282 = vrot.slane %v1274, %v1281
        %v1284 = vunpack.c.l.s4 1983009808
        %v1285 = vunpack.c.0.s8 %v1284
        %v1286 = vlaneseq
        %v1287 = vshrl.u32 %v1286, 7
        %v1288 = vsub.s32 %v1285, %v1287
        %v1289 = vrot.slane %v1275, %v1288
        %v1290 = vcombine.low %v1266, %v1282
        %v1291 = vcombine.high %v1266, %v1282
        %v1293 = vunpack.c.l.s4 1934713408
        %v1294 = vunpack.c.0.s8 %v1293
        %v1295 = vlaneseq
        %v1296 = vshrl.u32 %v1295, 7
        %v1297 = vsub.s32 %v1294, %v1296
        %v1298 = vrot.slane %v1290, %v1297
        %v1300 = vunpack.c.l.s4 1934713408
        %v1301 = vunpack.c.0.s8 %v1300
        %v1302 = vlaneseq
        %v1303 = vshrl.u32 %v1302, 7
        %v1304 = vsub.s32 %v1301, %v1303
        %v1305 = vrot.slane %v1291, %v1304
        %v1306 = vcombine.low %v1273, %v1289
        %v1307 = vcombine.high %v1273, %v1289
        %v1309 = vunpack.c.l.s4 1934713408
        %v1310 = vunpack.c.0.s8 %v1309
        %v1311 = vlaneseq
        %v1312 = vshrl.u32 %v1311, 7
        %v1313 = vsub.s32 %v1310, %v1312
        %v1314 = vrot.slane %v1306, %v1313
        %v1316 = vunpack.c.l.s4 1934713408
        %v1317 = vunpack.c.0.s8 %v1316
        %v1318 = vlaneseq
        %v1319 = vshrl.u32 %v1318, 7
        %v1320 = vsub.s32 %v1317, %v1319
        %v1321 = vrot.slane %v1307, %v1320
        %v1322 = vcombine.high %v1298, 0.0
        %v1323 = vcombine.high %v1305, 0.0
        %v1324 = vcombine.high %v1314, 0.0
        %v1325 = vcombine.high %v1321, 0.0
        %v1326 = vcombine.low %v1298, %v1305
        %v1328 = vunpack.c.l.s4 1983009808
        %v1329 = vunpack.c.0.s8 %v1328
        %v1330 = vlaneseq
        %v1331 = vshrl.u32 %v1330, 7
        %v1332 = vsub.s32 %v1329, %v1331
        %v1333 = vrot.slane %v1326, %v1332
        %v1334 = vcombine.low %v1322, %v1323
        %v1336 = vunpack.c.l.s4 1983009808
        %v1337 = vunpack.c.0.s8 %v1336
        %v1338 = vlaneseq
        %v1339 = vshrl.u32 %v1338, 7
        %v1340 = vsub.s32 %v1337, %v1339
        %v1341 = vrot.slane %v1334, %v1340
        %v1342 = vcombine.low %v1314, %v1321
        %v1344 = vunpack.c.l.s4 1983009808
        %v1345 = vunpack.c.0.s8 %v1344
        %v1346 = vlaneseq
        %v1347 = vshrl.u32 %v1346, 7
        %v1348 = vsub.s32 %v1345, %v1347
        %v1349 = vrot.slane %v1342, %v1348
        %v1350 = vcombine.low %v1324, %v1325
        %v1352 = vunpack.c.l.s4 1983009808
        %v1353 = vunpack.c.0.s8 %v1352
        %v1354 = vlaneseq
        %v1355 = vshrl.u32 %v1354, 7
        %v1356 = vsub.s32 %v1353, %v1355
        %v1357 = vrot.slane %v1350, %v1356
        %v1358 = vcombine.low %v1333, %v1341
        %v1359 = vcombine.high %v1333, %v1341
        %v1361 = vunpack.c.l.s4 1934713408
        %v1362 = vunpack.c.0.s8 %v1361
        %v1363 = vlaneseq
        %v1364 = vshrl.u32 %v1363, 7
        %v1365 = vsub.s32 %v1362, %v1364
        %v1366 = vrot.slane %v1358, %v1365
        %v1368 = vunpack.c.l.s4 1934713408
        %v1369 = vunpack.c.0.s8 %v1368
        %v1370 = vlaneseq
        %v1371 = vshrl.u32 %v1370, 7
        %v1372 = vsub.s32 %v1369, %v1371
        %v1373 = vrot.slane %v1359, %v1372
        %v1374 = vcombine.low %v1349, %v1357
        %v1375 = vcombine.high %v1349, %v1357
        %v1377 = vunpack.c.l.s4 1934713408
        %v1378 = vunpack.c.0.s8 %v1377
        %v1379 = vlaneseq
        %v1380 = vshrl.u32 %v1379, 7
        %v1381 = vsub.s32 %v1378, %v1380
        %v1382 = vrot.slane %v1374, %v1381
        %v1384 = vunpack.c.l.s4 1934713408
        %v1385 = vunpack.c.0.s8 %v1384
        %v1386 = vlaneseq
        %v1387 = vshrl.u32 %v1386, 7
        %v1388 = vsub.s32 %v1385, %v1387
        %v1389 = vrot.slane %v1375, %v1388
        %v1390 = vcombine.low %v1366, %v1382
        %v1391 = vcombine.high %v1366, %v1382
        %v1392 = vcombine.low %v1373, %v1389
        %v1393 = vcombine.high %v1373, %v1389
        %v1394 = vpack.c.bf16 %v1390, %v1390
        %v1395 = vpack.c.bf16 %v1391, %v1391
        %v1396 = vpack.c.bf16 %v1392, %v1392
        %v1397 = vpack.c.bf16 %v1393, %v1393
        %vm1398 = vcmask 64512
        %v1400 = vsel %vm1398, %v1092, 0
        %v1403 = vsel %vm1398, %v1244, 0
        %1405 = vmatprep.subr.bf16.mxu0 0
        %1406 = vmatpush1.bf16.xpose.msra.mxu0 %v1403
        %1407 = vmatprep.subr.bf16.mxu0 0
        %1408 = vmatpush1.bf16.xpose.msra.mxu0 0
        %1409 = vmatprep.subr.bf16.mxu0 0
        %1410 = vmatpush1.bf16.xpose.msra.mxu0 0
        %1411 = vmatprep.subr.bf16.mxu0 0
        %1412 = vmatpush1.bf16.xpose.msra.mxu0 0
        %1413 = vmatprep.subr.bf16.mxu0 0
        %1414 = vmatpush1.bf16.xpose.msra.mxu0 0
        %1415 = vmatprep.subr.bf16.mxu0 0
        %1416 = vmatpush1.bf16.xpose.msra.mxu0 0
        %1417 = vmatprep.subr.bf16.mxu0 0
        %1418 = vmatpush1.bf16.xpose.msra.mxu0 0
        %1419 = vmatprep.subr.bf16.mxu0 0
        %1420 = vmatpush1.bf16.xpose.msra.mxu0 0
        %1421 = vmatprep.subr.bf16.mxu0 0
        %1422 = vmatpush1.bf16.xpose.msra.mxu0 0
        %1423 = vmatprep.subr.bf16.mxu0 0
        %1424 = vmatpush1.bf16.xpose.msra.mxu0 0
        %1425 = vmatprep.subr.bf16.mxu0 0
        %1426 = vmatpush1.bf16.xpose.msra.mxu0 0
        %1427 = vmatprep.subr.bf16.mxu0 0
        %1428 = vmatpush1.bf16.xpose.msra.mxu0 0
        %1429 = vmatprep.subr.bf16.mxu0 0
        %1430 = vmatpush1.bf16.xpose.msra.mxu0 0
        %1431 = vmatprep.subr.bf16.mxu0 0
        %1432 = vmatpush1.bf16.xpose.msra.mxu0 0
        %1433 = vmatprep.subr.bf16.mxu0 0
        %1434 = vmatpush1.bf16.xpose.msra.mxu0 0
        %1435 = vmatprep.subr.bf16.mxu0 0
        %1436 = vmatpush1.bf16.xpose.msra.mxu0 0
        %1437 = vmatprep.mubr.bf16.mxu0 0
        %1438 = vmatmul.mubr.bf16.gmra.mrb[0].mxu0 %v1400
        %v1439 = vpop.f32.mrb[0].mxu0
        %v1440 = vadd.f32 0.0, %v1439
        %v1441 = vpop.f32.mrb[0].mxu0
        %v1442 = vpop.f32.mrb[0].mxu0
        %v1443 = vpop.f32.mrb[0].mxu0
        %1444 = vdwg.mxu0
        %v1446 = vsel %vm1398, %v1093, 0
        %v1449 = vsel %vm1398, %v1245, 0
        %1451 = vmatprep.subr.bf16.mxu0 0
        %1452 = vmatpush1.bf16.xpose.msra.mxu0 %v1449
        %1453 = vmatprep.subr.bf16.mxu0 0
        %1454 = vmatpush1.bf16.xpose.msra.mxu0 0
        %1455 = vmatprep.subr.bf16.mxu0 0
        %1456 = vmatpush1.bf16.xpose.msra.mxu0 0
        %1457 = vmatprep.subr.bf16.mxu0 0
        %1458 = vmatpush1.bf16.xpose.msra.mxu0 0
        %1459 = vmatprep.subr.bf16.mxu0 0
        %1460 = vmatpush1.bf16.xpose.msra.mxu0 0
        %1461 = vmatprep.subr.bf16.mxu0 0
        %1462 = vmatpush1.bf16.xpose.msra.mxu0 0
        %1463 = vmatprep.subr.bf16.mxu0 0
        %1464 = vmatpush1.bf16.xpose.msra.mxu0 0
        %1465 = vmatprep.subr.bf16.mxu0 0
        %1466 = vmatpush1.bf16.xpose.msra.mxu0 0
        %1467 = vmatprep.subr.bf16.mxu0 0
        %1468 = vmatpush1.bf16.xpose.msra.mxu0 0
        %1469 = vmatprep.subr.bf16.mxu0 0
        %1470 = vmatpush1.bf16.xpose.msra.mxu0 0
        %1471 = vmatprep.subr.bf16.mxu0 0
        %1472 = vmatpush1.bf16.xpose.msra.mxu0 0
        %1473 = vmatprep.subr.bf16.mxu0 0
        %1474 = vmatpush1.bf16.xpose.msra.mxu0 0
        %1475 = vmatprep.subr.bf16.mxu0 0
        %1476 = vmatpush1.bf16.xpose.msra.mxu0 0
        %1477 = vmatprep.subr.bf16.mxu0 0
        %1478 = vmatpush1.bf16.xpose.msra.mxu0 0
        %1479 = vmatprep.subr.bf16.mxu0 0
        %1480 = vmatpush1.bf16.xpose.msra.mxu0 0
        %1481 = vmatprep.subr.bf16.mxu0 0
        %1482 = vmatpush1.bf16.xpose.msra.mxu0 0
        %1483 = vmatprep.mubr.bf16.mxu0 0
        %1484 = vmatmul.mubr.bf16.gmra.mrb[0].mxu0 %v1446
        %v1485 = vpop.f32.mrb[0].mxu0
        %v1486 = vadd.f32 0.0, %v1485
        %v1487 = vpop.f32.mrb[0].mxu0
        %v1488 = vpop.f32.mrb[0].mxu0
        %v1489 = vpop.f32.mrb[0].mxu0
        %1490 = vdwg.mxu0
        %v1492 = vsel %vm1398, %v1094, 0
        %v1495 = vsel %vm1398, %v1246, 0
        %1497 = vmatprep.subr.bf16.mxu0 0
        %1498 = vmatpush1.bf16.xpose.msra.mxu0 %v1495
        %1499 = vmatprep.subr.bf16.mxu0 0
        %1500 = vmatpush1.bf16.xpose.msra.mxu0 0
        %1501 = vmatprep.subr.bf16.mxu0 0
        %1502 = vmatpush1.bf16.xpose.msra.mxu0 0
        %1503 = vmatprep.subr.bf16.mxu0 0
        %1504 = vmatpush1.bf16.xpose.msra.mxu0 0
        %1505 = vmatprep.subr.bf16.mxu0 0
        %1506 = vmatpush1.bf16.xpose.msra.mxu0 0
        %1507 = vmatprep.subr.bf16.mxu0 0
        %1508 = vmatpush1.bf16.xpose.msra.mxu0 0
        %1509 = vmatprep.subr.bf16.mxu0 0
        %1510 = vmatpush1.bf16.xpose.msra.mxu0 0
        %1511 = vmatprep.subr.bf16.mxu0 0
        %1512 = vmatpush1.bf16.xpose.msra.mxu0 0
        %1513 = vmatprep.subr.bf16.mxu0 0
        %1514 = vmatpush1.bf16.xpose.msra.mxu0 0
        %1515 = vmatprep.subr.bf16.mxu0 0
        %1516 = vmatpush1.bf16.xpose.msra.mxu0 0
        %1517 = vmatprep.subr.bf16.mxu0 0
        %1518 = vmatpush1.bf16.xpose.msra.mxu0 0
        %1519 = vmatprep.subr.bf16.mxu0 0
        %1520 = vmatpush1.bf16.xpose.msra.mxu0 0
        %1521 = vmatprep.subr.bf16.mxu0 0
        %1522 = vmatpush1.bf16.xpose.msra.mxu0 0
        %1523 = vmatprep.subr.bf16.mxu0 0
        %1524 = vmatpush1.bf16.xpose.msra.mxu0 0
        %1525 = vmatprep.subr.bf16.mxu0 0
        %1526 = vmatpush1.bf16.xpose.msra.mxu0 0
        %1527 = vmatprep.subr.bf16.mxu0 0
        %1528 = vmatpush1.bf16.xpose.msra.mxu0 0
        %1529 = vmatprep.mubr.bf16.mxu0 0
        %1530 = vmatmul.mubr.bf16.gmra.mrb[0].mxu0 %v1492
        %v1531 = vpop.f32.mrb[0].mxu0
        %v1532 = vadd.f32 0.0, %v1531
        %v1533 = vpop.f32.mrb[0].mxu0
        %v1534 = vpop.f32.mrb[0].mxu0
        %v1535 = vpop.f32.mrb[0].mxu0
        %1536 = vdwg.mxu0
        %v1538 = vsel %vm1398, %v1095, 0
        %v1541 = vsel %vm1398, %v1247, 0
        %1543 = vmatprep.subr.bf16.mxu0 0
        %1544 = vmatpush1.bf16.xpose.msra.mxu0 %v1541
        %1545 = vmatprep.subr.bf16.mxu0 0
        %1546 = vmatpush1.bf16.xpose.msra.mxu0 0
        %1547 = vmatprep.subr.bf16.mxu0 0
        %1548 = vmatpush1.bf16.xpose.msra.mxu0 0
        %1549 = vmatprep.subr.bf16.mxu0 0
        %1550 = vmatpush1.bf16.xpose.msra.mxu0 0
        %1551 = vmatprep.subr.bf16.mxu0 0
        %1552 = vmatpush1.bf16.xpose.msra.mxu0 0
        %1553 = vmatprep.subr.bf16.mxu0 0
        %1554 = vmatpush1.bf16.xpose.msra.mxu0 0
        %1555 = vmatprep.subr.bf16.mxu0 0
        %1556 = vmatpush1.bf16.xpose.msra.mxu0 0
        %1557 = vmatprep.subr.bf16.mxu0 0
        %1558 = vmatpush1.bf16.xpose.msra.mxu0 0
        %1559 = vmatprep.subr.bf16.mxu0 0
        %1560 = vmatpush1.bf16.xpose.msra.mxu0 0
        %1561 = vmatprep.subr.bf16.mxu0 0
        %1562 = vmatpush1.bf16.xpose.msra.mxu0 0
        %1563 = vmatprep.subr.bf16.mxu0 0
        %1564 = vmatpush1.bf16.xpose.msra.mxu0 0
        %1565 = vmatprep.subr.bf16.mxu0 0
        %1566 = vmatpush1.bf16.xpose.msra.mxu0 0
        %1567 = vmatprep.subr.bf16.mxu0 0
        %1568 = vmatpush1.bf16.xpose.msra.mxu0 0
        %1569 = vmatprep.subr.bf16.mxu0 0
        %1570 = vmatpush1.bf16.xpose.msra.mxu0 0
        %1571 = vmatprep.subr.bf16.mxu0 0
        %1572 = vmatpush1.bf16.xpose.msra.mxu0 0
        %1573 = vmatprep.subr.bf16.mxu0 0
        %1574 = vmatpush1.bf16.xpose.msra.mxu0 0
        %1575 = vmatprep.mubr.bf16.mxu0 0
        %1576 = vmatmul.mubr.bf16.gmra.mrb[0].mxu0 %v1538
        %v1577 = vpop.f32.mrb[0].mxu0
        %v1578 = vadd.f32 0.0, %v1577
        %v1579 = vpop.f32.mrb[0].mxu0
        %v1580 = vpop.f32.mrb[0].mxu0
        %v1581 = vpop.f32.mrb[0].mxu0
        %1582 = vdwg.mxu0
        %v1583 = vsel %vm1398, %v1440, -inf
        %1584 = vmax.xlane.f32.xlu0 %v1583
        %v1585 = vpop.xlane.xlu0 %1584
        %v1586 = vsel %vm1398, %v1486, -inf
        %1587 = vmax.xlane.f32.xlu0 %v1586
        %v1588 = vpop.xlane.xlu0 %1587
        %v1589 = vsel %vm1398, %v1532, -inf
        %1590 = vmax.xlane.f32.xlu0 %v1589
        %v1591 = vpop.xlane.xlu0 %1590
        %v1592 = vsel %vm1398, %v1578, -inf
        %1593 = vmax.xlane.f32.xlu0 %v1592
        %v1594 = vpop.xlane.xlu0 %1593
        %v1595 = vsub.f32 %v1440, %v1585
        %v1596 = vsub.f32 %v1486, %v1588
        %v1597 = vsub.f32 %v1532, %v1591
        %v1598 = vsub.f32 %v1578, %v1594
        %v1599 = vmul.f32 %v1595, 1.442695
        %v1600 = vpow.pop %v1599
        %v1601 = vmul.f32 %v1596, 1.442695
        %v1602 = vpow.pop %v1601
        %v1603 = vmul.f32 %v1597, 1.442695
        %v1604 = vpow.pop %v1603
        %v1605 = vmul.f32 %v1598, 1.442695
        %v1606 = vpow.pop %v1605
        %v1607 = vsel %vm1398, %v1600, 0.0
        %1608 = vadd.xlane.f32.xlu0 %v1607
        %v1609 = vpop.xlane.xlu0 %1608
        %v1610 = vsel %vm1398, %v1602, 0.0
        %1611 = vadd.xlane.f32.xlu0 %v1610
        %v1612 = vpop.xlane.xlu0 %1611
        %v1613 = vsel %vm1398, %v1604, 0.0
        %1614 = vadd.xlane.f32.xlu0 %v1613
        %v1615 = vpop.xlane.xlu0 %1614
        %v1616 = vsel %vm1398, %v1606, 0.0
        %1617 = vadd.xlane.f32.xlu0 %v1616
        %v1618 = vpop.xlane.xlu0 %1617
        %v1619 = vrcp.pop %v1609
        %v1620 = vrcp.pop %v1612
        %v1621 = vrcp.pop %v1615
        %v1622 = vrcp.pop %v1618
        %v1623 = vmul.f32 %v1600, %v1619
        %v1624 = vmul.f32 %v1602, %v1620
        %v1625 = vmul.f32 %v1604, %v1621
        %v1626 = vmul.f32 %v1606, %v1622
        %v1627 = vpack.c.bf16 %v1623, %v1623
        %v1628 = vpack.c.bf16 %v1624, %v1624
        %v1629 = vpack.c.bf16 %v1625, %v1625
        %v1630 = vpack.c.bf16 %v1626, %v1626
        %v1632 = vsel %vm1398, %v1627, 0
        %vm1634 = vcmask 1043456
        %v1636 = vsel %vm1634, %v1394, 0
        %1638 = vmatprep.subr.bf16.mxu0 0
        %1639 = vmatpush1.bf16.msra.mxu0 %v1636
        %1640 = vmatprep.subr.bf16.mxu0 0
        %1641 = vmatpush1.bf16.msra.mxu0 0
        %1642 = vmatprep.subr.bf16.mxu0 0
        %1643 = vmatpush1.bf16.msra.mxu0 0
        %1644 = vmatprep.subr.bf16.mxu0 0
        %1645 = vmatpush1.bf16.msra.mxu0 0
        %1646 = vmatprep.subr.bf16.mxu0 0
        %1647 = vmatpush1.bf16.msra.mxu0 0
        %1648 = vmatprep.subr.bf16.mxu0 0
        %1649 = vmatpush1.bf16.msra.mxu0 0
        %1650 = vmatprep.subr.bf16.mxu0 0
        %1651 = vmatpush1.bf16.msra.mxu0 0
        %1652 = vmatprep.subr.bf16.mxu0 0
        %1653 = vmatpush1.bf16.msra.mxu0 0
        %1654 = vmatprep.subr.bf16.mxu0 0
        %1655 = vmatpush1.bf16.msra.mxu0 0
        %1656 = vmatprep.subr.bf16.mxu0 0
        %1657 = vmatpush1.bf16.msra.mxu0 0
        %1658 = vmatprep.subr.bf16.mxu0 0
        %1659 = vmatpush1.bf16.msra.mxu0 0
        %1660 = vmatprep.subr.bf16.mxu0 0
        %1661 = vmatpush1.bf16.msra.mxu0 0
        %1662 = vmatprep.subr.bf16.mxu0 0
        %1663 = vmatpush1.bf16.msra.mxu0 0
        %1664 = vmatprep.subr.bf16.mxu0 0
        %1665 = vmatpush1.bf16.msra.mxu0 0
        %1666 = vmatprep.subr.bf16.mxu0 0
        %1667 = vmatpush1.bf16.msra.mxu0 0
        %1668 = vmatprep.subr.bf16.mxu0 0
        %1669 = vmatpush1.bf16.msra.mxu0 0
        %1670 = vmatprep.mubr.bf16.mxu0 0
        %1671 = vmatmul.mubr.bf16.gmra.mrb[0].mxu0 %v1632
        %v1672 = vpop.f32.mrb[0].mxu0
        %v1673 = vadd.f32 0.0, %v1672
        %v1674 = vpop.f32.mrb[0].mxu0
        %v1675 = vpop.f32.mrb[0].mxu0
        %v1676 = vpop.f32.mrb[0].mxu0
        %1677 = vdwg.mxu0
        %v1679 = vsel %vm1398, %v1628, 0
        %v1682 = vsel %vm1634, %v1395, 0
        %1684 = vmatprep.subr.bf16.mxu0 0
        %1685 = vmatpush1.bf16.msra.mxu0 %v1682
        %1686 = vmatprep.subr.bf16.mxu0 0
        %1687 = vmatpush1.bf16.msra.mxu0 0
        %1688 = vmatprep.subr.bf16.mxu0 0
        %1689 = vmatpush1.bf16.msra.mxu0 0
        %1690 = vmatprep.subr.bf16.mxu0 0
        %1691 = vmatpush1.bf16.msra.mxu0 0
        %1692 = vmatprep.subr.bf16.mxu0 0
        %1693 = vmatpush1.bf16.msra.mxu0 0
        %1694 = vmatprep.subr.bf16.mxu0 0
        %1695 = vmatpush1.bf16.msra.mxu0 0
        %1696 = vmatprep.subr.bf16.mxu0 0
        %1697 = vmatpush1.bf16.msra.mxu0 0
        %1698 = vmatprep.subr.bf16.mxu0 0
        %1699 = vmatpush1.bf16.msra.mxu0 0
        %1700 = vmatprep.subr.bf16.mxu0 0
        %1701 = vmatpush1.bf16.msra.mxu0 0
        %1702 = vmatprep.subr.bf16.mxu0 0
        %1703 = vmatpush1.bf16.msra.mxu0 0
        %1704 = vmatprep.subr.bf16.mxu0 0
        %1705 = vmatpush1.bf16.msra.mxu0 0
        %1706 = vmatprep.subr.bf16.mxu0 0
        %1707 = vmatpush1.bf16.msra.mxu0 0
        %1708 = vmatprep.subr.bf16.mxu0 0
        %1709 = vmatpush1.bf16.msra.mxu0 0
        %1710 = vmatprep.subr.bf16.mxu0 0
        %1711 = vmatpush1.bf16.msra.mxu0 0
        %1712 = vmatprep.subr.bf16.mxu0 0
        %1713 = vmatpush1.bf16.msra.mxu0 0
        %1714 = vmatprep.subr.bf16.mxu0 0
        %1715 = vmatpush1.bf16.msra.mxu0 0
        %1716 = vmatprep.mubr.bf16.mxu0 0
        %1717 = vmatmul.mubr.bf16.gmra.mrb[0].mxu0 %v1679
        %v1718 = vpop.f32.mrb[0].mxu0
        %v1719 = vadd.f32 0.0, %v1718
        %v1720 = vpop.f32.mrb[0].mxu0
        %v1721 = vpop.f32.mrb[0].mxu0
        %v1722 = vpop.f32.mrb[0].mxu0
        %1723 = vdwg.mxu0
        %v1725 = vsel %vm1398, %v1629, 0
        %v1728 = vsel %vm1634, %v1396, 0
        %1730 = vmatprep.subr.bf16.mxu0 0
        %1731 = vmatpush1.bf16.msra.mxu0 %v1728
        %1732 = vmatprep.subr.bf16.mxu0 0
        %1733 = vmatpush1.bf16.msra.mxu0 0
        %1734 = vmatprep.subr.bf16.mxu0 0
        %1735 = vmatpush1.bf16.msra.mxu0 0
        %1736 = vmatprep.subr.bf16.mxu0 0
        %1737 = vmatpush1.bf16.msra.mxu0 0
        %1738 = vmatprep.subr.bf16.mxu0 0
        %1739 = vmatpush1.bf16.msra.mxu0 0
        %1740 = vmatprep.subr.bf16.mxu0 0
        %1741 = vmatpush1.bf16.msra.mxu0 0
        %1742 = vmatprep.subr.bf16.mxu0 0
        %1743 = vmatpush1.bf16.msra.mxu0 0
        %1744 = vmatprep.subr.bf16.mxu0 0
        %1745 = vmatpush1.bf16.msra.mxu0 0
        %1746 = vmatprep.subr.bf16.mxu0 0
        %1747 = vmatpush1.bf16.msra.mxu0 0
        %1748 = vmatprep.subr.bf16.mxu0 0
        %1749 = vmatpush1.bf16.msra.mxu0 0
        %1750 = vmatprep.subr.bf16.mxu0 0
        %1751 = vmatpush1.bf16.msra.mxu0 0
        %1752 = vmatprep.subr.bf16.mxu0 0
        %1753 = vmatpush1.bf16.msra.mxu0 0
        %1754 = vmatprep.subr.bf16.mxu0 0
        %1755 = vmatpush1.bf16.msra.mxu0 0
        %1756 = vmatprep.subr.bf16.mxu0 0
        %1757 = vmatpush1.bf16.msra.mxu0 0
        %1758 = vmatprep.subr.bf16.mxu0 0
        %1759 = vmatpush1.bf16.msra.mxu0 0
        %1760 = vmatprep.subr.bf16.mxu0 0
        %1761 = vmatpush1.bf16.msra.mxu0 0
        %1762 = vmatprep.mubr.bf16.mxu0 0
        %1763 = vmatmul.mubr.bf16.gmra.mrb[0].mxu0 %v1725
        %v1764 = vpop.f32.mrb[0].mxu0
        %v1765 = vadd.f32 0.0, %v1764
        %v1766 = vpop.f32.mrb[0].mxu0
        %v1767 = vpop.f32.mrb[0].mxu0
        %v1768 = vpop.f32.mrb[0].mxu0
        %1769 = vdwg.mxu0
        %v1771 = vsel %vm1398, %v1630, 0
        %v1774 = vsel %vm1634, %v1397, 0
        %1776 = vmatprep.subr.bf16.mxu0 0
        %1777 = vmatpush1.bf16.msra.mxu0 %v1774
        %1778 = vmatprep.subr.bf16.mxu0 0
        %1779 = vmatpush1.bf16.msra.mxu0 0
        %1780 = vmatprep.subr.bf16.mxu0 0
        %1781 = vmatpush1.bf16.msra.mxu0 0
        %1782 = vmatprep.subr.bf16.mxu0 0
        %1783 = vmatpush1.bf16.msra.mxu0 0
        %1784 = vmatprep.subr.bf16.mxu0 0
        %1785 = vmatpush1.bf16.msra.mxu0 0
        %1786 = vmatprep.subr.bf16.mxu0 0
        %1787 = vmatpush1.bf16.msra.mxu0 0
        %1788 = vmatprep.subr.bf16.mxu0 0
        %1789 = vmatpush1.bf16.msra.mxu0 0
        %1790 = vmatprep.subr.bf16.mxu0 0
        %1791 = vmatpush1.bf16.msra.mxu0 0
        %1792 = vmatprep.subr.bf16.mxu0 0
        %1793 = vmatpush1.bf16.msra.mxu0 0
        %1794 = vmatprep.subr.bf16.mxu0 0
        %1795 = vmatpush1.bf16.msra.mxu0 0
        %1796 = vmatprep.subr.bf16.mxu0 0
        %1797 = vmatpush1.bf16.msra.mxu0 0
        %1798 = vmatprep.subr.bf16.mxu0 0
        %1799 = vmatpush1.bf16.msra.mxu0 0
        %1800 = vmatprep.subr.bf16.mxu0 0
        %1801 = vmatpush1.bf16.msra.mxu0 0
        %1802 = vmatprep.subr.bf16.mxu0 0
        %1803 = vmatpush1.bf16.msra.mxu0 0
        %1804 = vmatprep.subr.bf16.mxu0 0
        %1805 = vmatpush1.bf16.msra.mxu0 0
        %1806 = vmatprep.subr.bf16.mxu0 0
        %1807 = vmatpush1.bf16.msra.mxu0 0
        %1808 = vmatprep.mubr.bf16.mxu0 0
        %1809 = vmatmul.mubr.bf16.gmra.mrb[0].mxu0 %v1771
        %v1810 = vpop.f32.mrb[0].mxu0
        %v1811 = vadd.f32 0.0, %v1810
        %v1812 = vpop.f32.mrb[0].mxu0
        %v1813 = vpop.f32.mrb[0].mxu0
        %v1814 = vpop.f32.mrb[0].mxu0
        %1815 = vdwg.mxu0
        %v1816 = vcombine.low %v1673, %v1765
        %v1817 = vcombine.high %v1673, %v1765
        %v1819 = vunpack.c.l.s4 1983009808
        %v1820 = vunpack.c.0.s8 %v1819
        %v1821 = vlaneseq
        %v1822 = vshrl.u32 %v1821, 7
        %v1823 = vsub.s32 %v1820, %v1822
        %v1824 = vrot.slane %v1816, %v1823
        %v1826 = vunpack.c.l.s4 1983009808
        %v1827 = vunpack.c.0.s8 %v1826
        %v1828 = vlaneseq
        %v1829 = vshrl.u32 %v1828, 7
        %v1830 = vsub.s32 %v1827, %v1829
        %v1831 = vrot.slane %v1817, %v1830
        %v1832 = vcombine.low %v1719, %v1811
        %v1833 = vcombine.high %v1719, %v1811
        %v1835 = vunpack.c.l.s4 1983009808
        %v1836 = vunpack.c.0.s8 %v1835
        %v1837 = vlaneseq
        %v1838 = vshrl.u32 %v1837, 7
        %v1839 = vsub.s32 %v1836, %v1838
        %v1840 = vrot.slane %v1832, %v1839
        %v1842 = vunpack.c.l.s4 1983009808
        %v1843 = vunpack.c.0.s8 %v1842
        %v1844 = vlaneseq
        %v1845 = vshrl.u32 %v1844, 7
        %v1846 = vsub.s32 %v1843, %v1845
        %v1847 = vrot.slane %v1833, %v1846
        %v1848 = vcombine.low %v1824, %v1840
        %v1849 = vcombine.high %v1824, %v1840
        %v1851 = vunpack.c.l.s4 1934713408
        %v1852 = vunpack.c.0.s8 %v1851
        %v1853 = vlaneseq
        %v1854 = vshrl.u32 %v1853, 7
        %v1855 = vsub.s32 %v1852, %v1854
        %v1856 = vrot.slane %v1848, %v1855
        %v1858 = vunpack.c.l.s4 1934713408
        %v1859 = vunpack.c.0.s8 %v1858
        %v1860 = vlaneseq
        %v1861 = vshrl.u32 %v1860, 7
        %v1862 = vsub.s32 %v1859, %v1861
        %v1863 = vrot.slane %v1849, %v1862
        %v1864 = vcombine.low %v1831, %v1847
        %v1865 = vcombine.high %v1831, %v1847
        %v1867 = vunpack.c.l.s4 1934713408
        %v1868 = vunpack.c.0.s8 %v1867
        %v1869 = vlaneseq
        %v1870 = vshrl.u32 %v1869, 7
        %v1871 = vsub.s32 %v1868, %v1870
        %v1872 = vrot.slane %v1864, %v1871
        %v1874 = vunpack.c.l.s4 1934713408
        %v1875 = vunpack.c.0.s8 %v1874
        %v1876 = vlaneseq
        %v1877 = vshrl.u32 %v1876, 7
        %v1878 = vsub.s32 %v1875, %v1877
        %v1879 = vrot.slane %v1865, %v1878
        %v1880 = vcombine.high %v1856, 0.0
        %v1881 = vcombine.high %v1863, 0.0
        %v1882 = vcombine.high %v1872, 0.0
        %v1883 = vcombine.high %v1879, 0.0
        %v1884 = vcombine.low %v1856, %v1863
        %v1886 = vunpack.c.l.s4 1983009808
        %v1887 = vunpack.c.0.s8 %v1886
        %v1888 = vlaneseq
        %v1889 = vshrl.u32 %v1888, 7
        %v1890 = vsub.s32 %v1887, %v1889
        %v1891 = vrot.slane %v1884, %v1890
        %v1892 = vcombine.low %v1880, %v1881
        %v1894 = vunpack.c.l.s4 1983009808
        %v1895 = vunpack.c.0.s8 %v1894
        %v1896 = vlaneseq
        %v1897 = vshrl.u32 %v1896, 7
        %v1898 = vsub.s32 %v1895, %v1897
        %v1899 = vrot.slane %v1892, %v1898
        %v1900 = vcombine.low %v1872, %v1879
        %v1902 = vunpack.c.l.s4 1983009808
        %v1903 = vunpack.c.0.s8 %v1902
        %v1904 = vlaneseq
        %v1905 = vshrl.u32 %v1904, 7
        %v1906 = vsub.s32 %v1903, %v1905
        %v1907 = vrot.slane %v1900, %v1906
        %v1908 = vcombine.low %v1882, %v1883
        %v1910 = vunpack.c.l.s4 1983009808
        %v1911 = vunpack.c.0.s8 %v1910
        %v1912 = vlaneseq
        %v1913 = vshrl.u32 %v1912, 7
        %v1914 = vsub.s32 %v1911, %v1913
        %v1915 = vrot.slane %v1908, %v1914
        %v1916 = vcombine.low %v1891, %v1899
        %v1917 = vcombine.high %v1891, %v1899
        %v1919 = vunpack.c.l.s4 1934713408
        %v1920 = vunpack.c.0.s8 %v1919
        %v1921 = vlaneseq
        %v1922 = vshrl.u32 %v1921, 7
        %v1923 = vsub.s32 %v1920, %v1922
        %v1924 = vrot.slane %v1916, %v1923
        %v1926 = vunpack.c.l.s4 1934713408
        %v1927 = vunpack.c.0.s8 %v1926
        %v1928 = vlaneseq
        %v1929 = vshrl.u32 %v1928, 7
        %v1930 = vsub.s32 %v1927, %v1929
        %v1931 = vrot.slane %v1917, %v1930
        %v1932 = vcombine.low %v1907, %v1915
        %v1933 = vcombine.high %v1907, %v1915
        %v1935 = vunpack.c.l.s4 1934713408
        %v1936 = vunpack.c.0.s8 %v1935
        %v1937 = vlaneseq
        %v1938 = vshrl.u32 %v1937, 7
        %v1939 = vsub.s32 %v1936, %v1938
        %v1940 = vrot.slane %v1932, %v1939
        %v1942 = vunpack.c.l.s4 1934713408
        %v1943 = vunpack.c.0.s8 %v1942
        %v1944 = vlaneseq
        %v1945 = vshrl.u32 %v1944, 7
        %v1946 = vsub.s32 %v1943, %v1945
        %v1947 = vrot.slane %v1933, %v1946
        %v1948 = vcombine.low %v1924, %v1940
        %v1949 = vcombine.high %v1924, %v1940
        %v1950 = vcombine.low %v1931, %v1947
        %v1951 = vcombine.high %v1931, %v1947
        %1953 = vrot.lane.b32.xlu0 %v1949, 8
        %v1954 = vpop.permute.xlu0 %1953
        %1957 = vrot.lane.b32.xlu0 %v1950, 16
        %v1958 = vpop.permute.xlu0 %1957
        %1961 = vrot.lane.b32.xlu0 %v1951, 24
        %v1962 = vpop.permute.xlu0 %1961
        %v1964 = vsel %vm1398, %v1948, %v1954
        %vm1965 = vcmask 130048
        %v1966 = vsel %vm1965, %v1964, %v1958
        %vm1967 = vcmask 195584
        %v1968 = vsel %vm1967, %v1966, %v1962
        %v1969 = vld [vmem:[%s740] sm:$0xf]
        %v1970 = vld [vmem:[%s740 + $0x4] sm:$0xf]
        %v1971 = vld [vmem:[%s740 + $0x8] sm:$0xf]
        %v1972 = vld [vmem:[%s740 + $0xc] sm:$0xf]
        %v1973 = vpack.c.bf16 %v1968, %v1968
        %v1974 = vld [vmem:[%s743] sm:$0x1]
        %v1976 = vlaneseq
        %v1977 = vshrl.u32 %v1976, 7
        %v1978 = vsub.s32 0, %v1977
        %v1979 = vrot.slane %v1974, %v1978
        %v1985 = vunpack.c.l.b16 %v1969
        %v1986 = vunpack.c.l.b16 %v1970
        %v1987 = vunpack.c.l.b16 %v1971
        %v1988 = vunpack.c.l.b16 %v1972
        %v1989 = vpack.c.b16 %v1986, %v1985
        %v1990 = vpack.c.b16 %v1988, %v1987
        %v1992 = vsel %vm819, %v1973, 0
        %v1995 = vsel %vm819, %v1989, 0
        %v1998 = vsel %vm819, %v1990, 0
        %2000 = vmatprep.subr.bf16.mxu0 0
        %2001 = vmatpush1.bf16.xpose.msra.mxu0 %v1995
        %2002 = vmatprep.subr.bf16.mxu0 0
        %2003 = vmatpush1.bf16.xpose.msra.mxu0 %v1998
        %2004 = vmatprep.subr.bf16.mxu0 0
        %2005 = vmatpush1.bf16.xpose.msra.mxu0 0
        %2006 = vmatprep.subr.bf16.mxu0 0
        %2007 = vmatpush1.bf16.xpose.msra.mxu0 0
        %2008 = vmatprep.subr.bf16.mxu0 0
        %2009 = vmatpush1.bf16.xpose.msra.mxu0 0
        %2010 = vmatprep.subr.bf16.mxu0 0
        %2011 = vmatpush1.bf16.xpose.msra.mxu0 0
        %2012 = vmatprep.subr.bf16.mxu0 0
        %2013 = vmatpush1.bf16.xpose.msra.mxu0 0
        %2014 = vmatprep.subr.bf16.mxu0 0
        %2015 = vmatpush1.bf16.xpose.msra.mxu0 0
        %2016 = vmatprep.subr.bf16.mxu0 0
        %2017 = vmatpush1.bf16.xpose.msra.mxu0 0
        %2018 = vmatprep.subr.bf16.mxu0 0
        %2019 = vmatpush1.bf16.xpose.msra.mxu0 0
        %2020 = vmatprep.subr.bf16.mxu0 0
        %2021 = vmatpush1.bf16.xpose.msra.mxu0 0
        %2022 = vmatprep.subr.bf16.mxu0 0
        %2023 = vmatpush1.bf16.xpose.msra.mxu0 0
        %2024 = vmatprep.subr.bf16.mxu0 0
        %2025 = vmatpush1.bf16.xpose.msra.mxu0 0
        %2026 = vmatprep.subr.bf16.mxu0 0
        %2027 = vmatpush1.bf16.xpose.msra.mxu0 0
        %2028 = vmatprep.subr.bf16.mxu0 0
        %2029 = vmatpush1.bf16.xpose.msra.mxu0 0
        %2030 = vmatprep.subr.bf16.mxu0 0
        %2031 = vmatpush1.bf16.xpose.msra.mxu0 0
        %2032 = vmatprep.mubr.bf16.mxu0 0
        %2033 = vmatmul.mubr.bf16.gmra.mrb[0].mxu0 %v1992
        %v2034 = vpop.f32.mrb[0].mxu0
        %v2035 = vadd.f32 %v1979, %v2034
        %v2036 = vpop.f32.mrb[0].mxu0
        %v2037 = vpop.f32.mrb[0].mxu0
        %v2038 = vpop.f32.mrb[0].mxu0
        %2039 = vdwg.mxu0
        %v2040 = vadd.f32 %v780, %v2035
        %v2041 = vld [vmem:[%s746] sm:$0x1]
        %v2042 = vld [vmem:[%s749] sm:$0x1]
        %v2043 = vsel %vm819, %v2040, 0.0
        %2044 = vadd.xlane.f32.xlu0 %v2043
        %v2045 = vpop.xlane.xlu0 %2044
        %v2046 = vrcp.pop 32.0
        %v2047 = vmul.f32 %v2045, %v2046
        %v2048 = vsub.f32 %v2040, %v2047
        %v2049 = vmul.f32 %v2048, %v2048
        %v2050 = vsel %vm819, %v2049, 0.0
        %2051 = vadd.xlane.f32.xlu0 %v2050
        %v2052 = vpop.xlane.xlu0 %2051
        %v2053 = vmul.f32 %v2052, %v2046
        %v2054 = vadd.f32 %v2053, 1e-05
        %v2055 = vrsqrt.pop %v2054
        %v2056 = vmul.f32 %v2048, %v2055
        %v2058 = vlaneseq
        %v2059 = vshrl.u32 %v2058, 7
        %v2060 = vsub.s32 0, %v2059
        %v2061 = vrot.slane %v2041, %v2060
        %v2063 = vmul.f32 %v2056, %v2061
        %v2065 = vlaneseq
        %v2066 = vshrl.u32 %v2065, 7
        %v2067 = vsub.s32 0, %v2066
        %v2068 = vrot.slane %v2042, %v2067
        %v2070 = vadd.f32 %v2063, %v2068
        %v2071 = vld [vmem:[%s754] sm:$0xf]
        %v2072 = vld [vmem:[%s754 + $0x4] sm:$0xf]
        %v2073 = vld [vmem:[%s754 + $0x8] sm:$0xf]
        %v2074 = vld [vmem:[%s754 + $0xc] sm:$0xf]
        %v2075 = vld [vmem:[%s754 + $0x10] sm:$0xf]
        %v2076 = vld [vmem:[%s754 + $0x14] sm:$0xf]
        %v2077 = vld [vmem:[%s754 + $0x18] sm:$0xf]
        %v2078 = vld [vmem:[%s754 + $0x1c] sm:$0xf]
        %v2079 = vpack.c.bf16 %v2070, %v2070
        %v2080 = vld [vmem:[%s757] sm:$0x1]
        %v2082 = vlaneseq
        %v2083 = vshrl.u32 %v2082, 7
        %v2084 = vsub.s32 0, %v2083
        %v2085 = vrot.slane %v2080, %v2084
        %v2095 = vunpack.c.l.b16 %v2071
        %v2096 = vunpack.c.l.b16 %v2072
        %v2097 = vunpack.c.l.b16 %v2073
        %v2098 = vunpack.c.l.b16 %v2074
        %v2099 = vunpack.c.l.b16 %v2075
        %v2100 = vunpack.c.l.b16 %v2076
        %v2101 = vunpack.c.l.b16 %v2077
        %v2102 = vunpack.c.l.b16 %v2078
        %v2103 = vpack.c.b16 %v2096, %v2095
        %v2104 = vpack.c.b16 %v2098, %v2097
        %v2105 = vpack.c.b16 %v2100, %v2099
        %v2106 = vpack.c.b16 %v2102, %v2101
        %v2108 = vsel %vm819, %v2079, 0
        %v2111 = vsel %vm819, %v2103, 0
        %v2114 = vsel %vm819, %v2104, 0
        %v2117 = vsel %vm819, %v2105, 0
        %v2120 = vsel %vm819, %v2106, 0
        %2122 = vmatprep.subr.bf16.mxu0 0
        %2123 = vmatpush1.bf16.xpose.msra.mxu0 %v2111
        %2124 = vmatprep.subr.bf16.mxu0 0
        %2125 = vmatpush1.bf16.xpose.msra.mxu0 %v2114
        %2126 = vmatprep.subr.bf16.mxu0 0
        %2127 = vmatpush1.bf16.xpose.msra.mxu0 %v2117
        %2128 = vmatprep.subr.bf16.mxu0 0
        %2129 = vmatpush1.bf16.xpose.msra.mxu0 %v2120
        %2130 = vmatprep.subr.bf16.mxu0 0
        %2131 = vmatpush1.bf16.xpose.msra.mxu0 0
        %2132 = vmatprep.subr.bf16.mxu0 0
        %2133 = vmatpush1.bf16.xpose.msra.mxu0 0
        %2134 = vmatprep.subr.bf16.mxu0 0
        %2135 = vmatpush1.bf16.xpose.msra.mxu0 0
        %2136 = vmatprep.subr.bf16.mxu0 0
        %2137 = vmatpush1.bf16.xpose.msra.mxu0 0
        %2138 = vmatprep.subr.bf16.mxu0 0
        %2139 = vmatpush1.bf16.xpose.msra.mxu0 0
        %2140 = vmatprep.subr.bf16.mxu0 0
        %2141 = vmatpush1.bf16.xpose.msra.mxu0 0
        %2142 = vmatprep.subr.bf16.mxu0 0
        %2143 = vmatpush1.bf16.xpose.msra.mxu0 0
        %2144 = vmatprep.subr.bf16.mxu0 0
        %2145 = vmatpush1.bf16.xpose.msra.mxu0 0
        %2146 = vmatprep.subr.bf16.mxu0 0
        %2147 = vmatpush1.bf16.xpose.msra.mxu0 0
        %2148 = vmatprep.subr.bf16.mxu0 0
        %2149 = vmatpush1.bf16.xpose.msra.mxu0 0
        %2150 = vmatprep.subr.bf16.mxu0 0
        %2151 = vmatpush1.bf16.xpose.msra.mxu0 0
        %2152 = vmatprep.subr.bf16.mxu0 0
        %2153 = vmatpush1.bf16.xpose.msra.mxu0 0
        %2154 = vmatprep.mubr.bf16.mxu0 0
        %2155 = vmatmul.mubr.bf16.gmra.mrb[0].mxu0 %v2108
        %v2156 = vpop.f32.mrb[0].mxu0
        %v2157 = vadd.f32 %v2085, %v2156
        %v2158 = vpop.f32.mrb[0].mxu0
        %v2159 = vpop.f32.mrb[0].mxu0
        %v2160 = vpop.f32.mrb[0].mxu0
        %2161 = vdwg.mxu0
        %v2162 = vmax.f32 %v2157, 0.0
        %v2163 = vld [vmem:[%s762] sm:$0xf]
        %v2164 = vld [vmem:[%s762 + $0x4] sm:$0xf]
        %v2165 = vld [vmem:[%s762 + $0x8] sm:$0xf]
        %v2166 = vld [vmem:[%s762 + $0xc] sm:$0xf]
        %v2167 = vpack.c.bf16 %v2162, %v2162
        %v2168 = vld [vmem:[%s765] sm:$0x1]
        %v2170 = vlaneseq
        %v2171 = vshrl.u32 %v2170, 7
        %v2172 = vsub.s32 0, %v2171
        %v2173 = vrot.slane %v2168, %v2172
        %v2179 = vunpack.c.l.b16 %v2163
        %v2180 = vunpack.c.l.b16 %v2164
        %v2181 = vunpack.c.l.b16 %v2165
        %v2182 = vunpack.c.l.b16 %v2166
        %v2183 = vpack.c.b16 %v2180, %v2179
        %v2184 = vpack.c.b16 %v2182, %v2181
        %vm2185 = vcmask 523264
        %v2187 = vsel %vm2185, %v2167, 0
        %v2190 = vsel %vm2185, %v2183, 0
        %v2193 = vsel %vm2185, %v2184, 0
        %2195 = vmatprep.subr.bf16.mxu0 0
        %2196 = vmatpush1.bf16.xpose.msra.mxu0 %v2190
        %2197 = vmatprep.subr.bf16.mxu0 0
        %2198 = vmatpush1.bf16.xpose.msra.mxu0 %v2193
        %2199 = vmatprep.subr.bf16.mxu0 0
        %2200 = vmatpush1.bf16.xpose.msra.mxu0 0
        %2201 = vmatprep.subr.bf16.mxu0 0
        %2202 = vmatpush1.bf16.xpose.msra.mxu0 0
        %2203 = vmatprep.subr.bf16.mxu0 0
        %2204 = vmatpush1.bf16.xpose.msra.mxu0 0
        %2205 = vmatprep.subr.bf16.mxu0 0
        %2206 = vmatpush1.bf16.xpose.msra.mxu0 0
        %2207 = vmatprep.subr.bf16.mxu0 0
        %2208 = vmatpush1.bf16.xpose.msra.mxu0 0
        %2209 = vmatprep.subr.bf16.mxu0 0
        %2210 = vmatpush1.bf16.xpose.msra.mxu0 0
        %2211 = vmatprep.subr.bf16.mxu0 0
        %2212 = vmatpush1.bf16.xpose.msra.mxu0 0
        %2213 = vmatprep.subr.bf16.mxu0 0
        %2214 = vmatpush1.bf16.xpose.msra.mxu0 0
        %2215 = vmatprep.subr.bf16.mxu0 0
        %2216 = vmatpush1.bf16.xpose.msra.mxu0 0
        %2217 = vmatprep.subr.bf16.mxu0 0
        %2218 = vmatpush1.bf16.xpose.msra.mxu0 0
        %2219 = vmatprep.subr.bf16.mxu0 0
        %2220 = vmatpush1.bf16.xpose.msra.mxu0 0
        %2221 = vmatprep.subr.bf16.mxu0 0
        %2222 = vmatpush1.bf16.xpose.msra.mxu0 0
        %2223 = vmatprep.subr.bf16.mxu0 0
        %2224 = vmatpush1.bf16.xpose.msra.mxu0 0
        %2225 = vmatprep.subr.bf16.mxu0 0
        %2226 = vmatpush1.bf16.xpose.msra.mxu0 0
        %2227 = vmatprep.mubr.bf16.mxu0 0
        %2228 = vmatmul.mubr.bf16.gmra.mrb[0].mxu0 %v2187
        %v2229 = vpop.f32.mrb[0].mxu0
        %v2230 = vadd.f32 %v2173, %v2229
        %v2231 = vpop.f32.mrb[0].mxu0
        %v2232 = vpop.f32.mrb[0].mxu0
        %v2233 = vpop.f32.mrb[0].mxu0
        %2234 = vdwg.mxu0
        %v2235 = vadd.f32 %v2070, %v2230
        %v2236 = vld [vmem:[%s768] sm:$0x1]
        %v2237 = vld [vmem:[%s771] sm:$0x1]
        %v2238 = vsel %vm819, %v2235, 0.0
        %2239 = vadd.xlane.f32.xlu0 %v2238
        %v2240 = vpop.xlane.xlu0 %2239
        %v2241 = vmul.f32 %v2240, %v2046
        %v2242 = vsub.f32 %v2235, %v2241
        %v2243 = vmul.f32 %v2242, %v2242
        %v2244 = vsel %vm819, %v2243, 0.0
        %2245 = vadd.xlane.f32.xlu0 %v2244
        %v2246 = vpop.xlane.xlu0 %2245
        %v2247 = vmul.f32 %v2246, %v2046
        %v2248 = vadd.f32 %v2247, 1e-05
        %v2249 = vrsqrt.pop %v2248
        %v2250 = vmul.f32 %v2242, %v2249
        %v2252 = vlaneseq
        %v2253 = vshrl.u32 %v2252, 7
        %v2254 = vsub.s32 0, %v2253
        %v2255 = vrot.slane %v2236, %v2254
        %v2257 = vmul.f32 %v2250, %v2255
        %v2259 = vlaneseq
        %v2260 = vshrl.u32 %v2259, 7
        %v2261 = vsub.s32 0, %v2260
        %v2262 = vrot.slane %v2237, %v2261
        %v2264 = vadd.f32 %v2257, %v2262
        %2265 = vst.msk [vmem:[%s711] sm:$0xff] %vm819, %v2264
        %s2266 = sand.u32 %s466, 1
        %s2267 = scalar_lea.sflag [#allocation3], %s2266
        %s2268 = sand.u32 %s466, 1
        %s2269 = smul.addr %s2268, 8
        %s2270 = scalar_lea.vmem [#allocation2], %s2269
        // Predicated region
        $region89: #{tpu_custom_call.1} parent=83 // pred_check
          %p2271 = pneg %p476
        $region90: #{tpu_custom_call.1} parent=83 // pred_check_branch
          %2273 = sbr.rel (%p2271) target = $region92
        $region91: #{tpu_custom_call.1} parent=83 // pred_region
          %s2275 = ssub.s32 128, 128
          %2276 = vsyncadd %s2267, %s2275
          %s2277 = smul.addr %s34, 128
          %s2278 = scalar_lea.hbm %s16, %s2277
          %s2280 = sshll.u32 %s2270, 4
          %s2281 = int_to_ptr.vmem [resolvable:$true] %s2280
          %2283 = dma.vmem_to_hbm [thread:$0]  %s2281, 128, %s2278, %s2267
        $region92: #{tpu_custom_call.1} parent=83 // pred_fallthru
          _
      $region84: #{tpu_custom_call.1} parent=5 // pred_fallthru
        _
      %p2284 = scmp.le.s32.totalorder 2, %s25
      // Predicated region
      $region93: #{tpu_custom_call.1} parent=5 // pred_check
        %p2285 = pneg %p2284
      $region94: #{tpu_custom_call.1} parent=5 // pred_check_branch
        %2287 = sbr.rel (%p2285) target = $region96
      $region95: #{tpu_custom_call.1} parent=5 // pred_region
        %s2288 = ssub.s32 %s25, 2
        // Predicated region
        $region97: #{tpu_custom_call.1} parent=95 // pred_check
          %p2289 = pneg %p482
        $region98: #{tpu_custom_call.1} parent=95 // pred_check_branch
          %2291 = sbr.rel (%p2289) target = $region100
        $region99: #{tpu_custom_call.1} parent=95 // pred_region
          %s2292 = sand.u32 %s467, 1
          %s2293 = scalar_lea.sflag [#allocation3], %s2292
          %s2294 = sand.u32 %s467, 1
          %s2295 = smul.addr %s2294, 8
          %s2296 = scalar_lea.vmem [#allocation2], %s2295
          %2297 = dma.done %s2293, 128
        $region100: #{tpu_custom_call.1} parent=95 // pred_fallthru
          _
      $region96: #{tpu_custom_call.1} parent=5 // pred_fallthru
        _
    $region6: #{tpu_custom_call.1} parent=1 // loop_footer
      %s29 = sadd.s32 1, %s25
    $region7: #{tpu_custom_call.1} parent=1 // loop_footer_branch
      %24 = sbr.rel target = $region3
    $region8: #{tpu_custom_call.1} parent=1 // loop_exit
      _
    %2298 = vsyncpa [#allocation3], 1
    %s2299 = scalar_lea.sflag [#allocation3], 1
    %2300 = vsyncpa %s2299, 1

</llo_original>
